<compile_context>
chip_gen: v6e
topology: v6e:2x2x1
jax: 0.10.0
libtpu: 0.0.40
codegen_flags: <defaults>
</compile_context>

<pallas_src>
import functools
import math

import jax
import jax.numpy as jnp
from jax.experimental import pallas as pl
from jax.experimental.pallas import tpu as pltpu


def _round_up(x, m):
    return ((x + m - 1) // m) * m


def _vmem_capacity_bytes():
    try:
        info = pltpu.get_tpu_info()
        cap = getattr(info, "vmem_capacity_bytes", None)
        if cap:
            return int(cap)
    except Exception:
        pass
    return 64 * 1024 * 1024  # conservative fallback (v7x per-TC VMEM)


def _pick_tile_m(m_out, halo_pad, k_dim, n_taps, c_out_p, x_isz, w_isz, budget, tile_m):
    # per-row bytes: double-buffered x-window row + double-buffered out row + f32 acc row
    per_row = 2 * k_dim * x_isz + 2 * c_out_p * x_isz + c_out_p * 4
    fixed = 2 * halo_pad * k_dim * x_isz + 2 * n_taps * k_dim * c_out_p * w_isz + (1 << 20)
    if tile_m is None:
        tm = (budget - fixed) // per_row if budget > fixed else 128
        tm = max(int(tm), 128)
    else:
        tm = int(tile_m)
    tm = min(tm, _round_up(m_out, 8))
    tm = max(tm, halo_pad, 8)          # window build requires tm >= halo_pad
    return _round_up(tm, 8)


def _eqconv_kernel(x_ref, w_ref, b_ref, o_ref, *, offs, scale):
    """One (batch, spatial-tile) grid step.

    x_ref: (1, 1, tm + halo_pad, K)   overlapped flat-spatial window (native dtype)
    w_ref: (n_taps, K, C_out_p)       unscaled weight taps (native dtype)
    b_ref: (1, C_out_p)
    o_ref: (1, tm, C_out_p)           stride-1 output rows (padded-width form)
    """
    tm = o_ref.shape[1]
    # First tap initializes the accumulator (no zeros + add); remaining taps accumulate.
    acc = jnp.dot(x_ref[0, 0, offs[0]:offs[0] + tm, :], w_ref[0],
                  preferred_element_type=jnp.float32)
    for t in range(1, len(offs)):
        off = offs[t]
        acc = acc + jnp.dot(x_ref[0, 0, off:off + tm, :], w_ref[t],
                            preferred_element_type=jnp.float32)
    out = acc * scale + b_ref[...].astype(jnp.float32)
    o_ref[0] = out.astype(o_ref.dtype)


def equalized_conv(x, weight, bias=None, *, stride=1, pad=0, tile_m=None):
    """EqualizedConv forward. x: (N,C_in,H,W), weight: (C_out,C_in,ks,ks), bias: (C_out,)."""
    n, c_in, h, w = x.shape
    c_out, c_in_w, ks, ks2 = weight.shape
    assert c_in_w == c_in and ks == ks2
    scale = math.sqrt(2.0 / (c_in * ks * ks))

    h_p, w_p = h + 2 * pad, w + 2 * pad
    h_out1, w_out1 = h_p - ks + 1, w_p - ks + 1           # stride-1 output extent
    w_pp = _round_up(w_p, 8)                              # 8-aligned row width

    # channels-last; spatial pad; extra right-columns of zeros to reach w_pp.
    x_nhwc = jnp.transpose(x, (0, 2, 3, 1))
    x_sp = jnp.pad(x_nhwc, ((0, 0), (pad, pad), (pad, pad + (w_pp - w_p)), (0, 0)))

    fold = c_in < 128   # fold kw taps into the lane axis (im2col over width)
    if fold:
        cols = [x_sp] + [
            jnp.pad(x_sp[:, :, kwi:, :], ((0, 0), (0, 0), (0, kwi), (0, 0)))
            for kwi in range(1, ks)]
        x_feat = jnp.concatenate(cols, axis=-1)            # (N, H_p, W_pp, ks*C_in)
        k_dim, n_taps = ks * c_in, ks
        offs = tuple(kh * w_pp for kh in range(ks))        # all multiples of 8
        w_taps = jnp.transpose(weight, (2, 3, 1, 0)).reshape(ks, ks * c_in, c_out)
    else:
        x_feat = x_sp                                      # (N, H_p, W_pp, C_in)
        k_dim, n_taps = c_in, ks * ks
        offs = tuple(kh * w_pp + kwi for kh in range(ks) for kwi in range(ks))
        w_taps = jnp.transpose(weight, (2, 3, 1, 0)).reshape(ks * ks, c_in, c_out)

    # lane-dense output: pad C_out to a multiple of 128 (stripped after the call).
    c_out_p = _round_up(c_out, 128)
    if c_out_p != c_out:
        w_taps = jnp.pad(w_taps, ((0, 0), (0, 0), (0, c_out_p - c_out)))
    if bias is None:
        bias = jnp.zeros((c_out,), x.dtype)
    b2d = jnp.pad(bias, (0, c_out_p - c_out)).reshape(1, c_out_p)

    halo = max(offs)
    halo_pad = _round_up(halo, 8)
    m_out = h_out1 * w_pp

    x_isz = jnp.dtype(x.dtype).itemsize
    w_isz = jnp.dtype(weight.dtype).itemsize
    vmem_cap = _vmem_capacity_bytes()
    tm = _pick_tile_m(m_out, halo_pad, k_dim, n_taps, c_out_p, x_isz, w_isz,
                      vmem_cap // 4, tile_m)
    num_m = -(-m_out // tm)
    win = tm + halo_pad

    # Overlapped-window slab: each grid step reads exactly one (win, K) block, so the
    # halo is never DMA'd as a full duplicate tile and no in-kernel concat is needed.
    x_flat = x_feat.reshape(n, h_p * w_pp, k_dim)
    rows_total = (num_m + 1) * tm
    x_flat = jnp.pad(x_flat, ((0, 0), (0, rows_total - x_flat.shape[1]), (0, 0)))
    x_main = x_flat[:, :num_m * tm, :].reshape(n, num_m, tm, k_dim)
    x_next = x_flat[:, tm:, :].reshape(n, num_m, tm, k_dim)
    x_win = jnp.concatenate([x_main, x_next[:, :, :halo_pad, :]], axis=2)

    # per-step VMEM footprint (double-buffered x window + out, weights, f32 acc) ->
    # explicit vmem limit; tm already sized so this stays within budget on v5e/v6e/v7x.
    footprint = (2 * win * k_dim * x_isz + 2 * tm * c_out_p * x_isz
                 + 2 * n_taps * k_dim * c_out_p * w_isz + tm * c_out_p * 4 + (1 << 20))
    vmem_limit = int(max(32 << 20, min(2 * footprint + (2 << 20), (vmem_cap * 3) // 4)))

    kernel = functools.partial(_eqconv_kernel, offs=offs, scale=scale)
    out_flat = pl.pallas_call(
        kernel,
        out_shape=jax.ShapeDtypeStruct((n, num_m * tm, c_out_p), x.dtype),
        grid_spec=pltpu.PrefetchScalarGridSpec(
            num_scalar_prefetch=0,
            grid=(n, num_m),
            in_specs=[
                pl.BlockSpec((1, 1, win, k_dim), lambda b, m: (b, m, 0, 0)),
                # TODO(synk): single-buffer these grid-invariant blocks
                # (pipeline_mode=pl.Buffered(1)) once confirmed supported; matters most
                # for 512-channel weights on v7x's 64 MiB VMEM.
                pl.BlockSpec((n_taps, k_dim, c_out_p), lambda b, m: (0, 0, 0)),
                pl.BlockSpec((1, c_out_p), lambda b, m: (0, 0)),
            ],
            out_specs=pl.BlockSpec((1, tm, c_out_p), lambda b, m: (b, m, 0)),
        ),
        compiler_params=pltpu.CompilerParams(
            dimension_semantics=("parallel", "parallel"),
            vmem_limit_bytes=vmem_limit,
        ),
    )(x_win, w_taps, b2d)

    # drop padded rows / garbage padded-width columns / channel padding, back to NCHW.
    out = out_flat[:, :m_out, :].reshape(n, h_out1, w_pp, c_out_p)[:, :, :w_out1, :c_out]
    if stride > 1:
        # TODO(synk): stride>1 still computes the full stride-1 output and subsamples;
        # a strided output index_map would avoid the redundant MXU work and writes.
        out = out[:, ::stride, ::stride, :]
    return jnp.transpose(out, (0, 3, 1, 2))


if __name__ == "__main__":
    def _ref(x, weight, bias, stride, pad):
        ni, ks = weight.shape[1], weight.shape[2]
        scale = math.sqrt(2.0 / (ni * ks * ks))
        r = jax.lax.conv_general_dilated(
            x, weight * scale, window_strides=(stride, stride),
            padding=((pad, pad), (pad, pad)),
            dimension_numbers=("NCHW", "OIHW", "NCHW"))
        return r + bias.reshape(1, -1, 1, 1)

    key = jax.random.PRNGKey(0)
    kx, kw_, kb, kx2, kw2, kb2 = jax.random.split(key, 6)

    # Test 1: small channels -> folded (im2col over width) path, stride 1.
    n, ni, no, ks, stride, pad = 2, 4, 8, 3, 1, 1
    h = w = 16
    x = jax.random.normal(kx, (n, ni, h, w), dtype=jnp.float32)
    weight = jax.random.normal(kw_, (no, ni, ks, ks), dtype=jnp.float32)
    bias = jax.random.normal(kb, (no,), dtype=jnp.float32)
    out = equalized_conv(x, weight, bias, stride=stride, pad=pad)
    jax.block_until_ready(out)
    ref = _ref(x, weight, bias, stride, pad)
    assert out.shape == ref.shape
    err1 = float(jnp.max(jnp.abs(out - ref)))
    assert jnp.allclose(out, ref, atol=2e-3, rtol=2e-3), err1

    # Test 2: C_in >= 128 -> per-tap path, plus the stride>1 wrapper branch.
    n2, ni2, no2, ks2, stride2, pad2, h2 = 2, 128, 8, 3, 2, 1, 8
    x2 = jax.random.normal(kx2, (n2, ni2, h2, h2), dtype=jnp.float32)
    w2 = jax.random.normal(kw2, (no2, ni2, ks2, ks2), dtype=jnp.float32)
    b2 = jax.random.normal(kb2, (no2,), dtype=jnp.float32)
    out2 = equalized_conv(x2, w2, b2, stride=stride2, pad=pad2)
    jax.block_until_ready(out2)
    ref2 = _ref(x2, w2, b2, stride2, pad2)
    assert out2.shape == ref2.shape
    # looser tolerance: K = 1152 contraction; both kernel and XLA conv run f32 matmuls
    # at TPU default (reduced) MXU precision with different accumulation order.
    err2 = float(jnp.max(jnp.abs(out2 - ref2)))
    assert jnp.allclose(out2, ref2, atol=6e-2, rtol=6e-2), err2

    print("KERNEL_OK")
</pallas_src>

<mosaic_0001>
module attributes {stable_mosaic.version = 11 : i64} {
  func.func @_eqconv_kernel(%arg0: i32, %arg1: i32, %arg2: memref<1x1x432x12xf32, #tpu.memory_space<vmem>>, %arg3: memref<3x12x128xf32, #tpu.memory_space<vmem>>, %arg4: memref<1x128xf32, #tpu.memory_space<vmem>>, %arg5: memref<1x384x128xf32, #tpu.memory_space<vmem>>) attributes {dimension_semantics = [#tpu.dimension_semantics<parallel>, #tpu.dimension_semantics<parallel>], iteration_bounds = array<i64: 2, 1>, scalar_prefetch = 0 : i64, scratch_operands = 0 : i64, tpu.core_type = #tpu.core_type<tc>, window_params = [{transform_indices = @transform_0, window_bounds = array<i64: 1, 1, 432, 12>}, {pipeline_mode = #tpu.pipeline_mode<synchronous>, transform_indices = @transform_1, window_bounds = array<i64: 3, 12, 128>}, {pipeline_mode = #tpu.pipeline_mode<synchronous>, transform_indices = @transform_2, window_bounds = array<i64: 1, 128>}, {transform_indices = @transform_3, window_bounds = array<i64: 1, 384, 128>}]} {
    %c0 = arith.constant 0 : index
    %c0_0 = arith.constant 0 : index
    %c0_1 = arith.constant 0 : index
    %c0_2 = arith.constant 0 : index
    %0 = vector.load %arg2[%c0, %c0_0, %c0_1, %c0_2] : memref<1x1x432x12xf32, #tpu.memory_space<vmem>>, vector<1x1x384x12xf32>
    %1 = vector.shape_cast %0 : vector<1x1x384x12xf32> to vector<384x12xf32>
    %c0_3 = arith.constant 0 : index
    %c0_4 = arith.constant 0 : index
    %c0_5 = arith.constant 0 : index
    %2 = vector.load %arg3[%c0_3, %c0_4, %c0_5] : memref<3x12x128xf32, #tpu.memory_space<vmem>>, vector<1x12x128xf32>
    %3 = vector.shape_cast %2 : vector<1x12x128xf32> to vector<12x128xf32>
    %cst = arith.constant dense<0.000000e+00> : vector<384x128xf32>
    %4 = tpu.matmul %1, %3, %cst {dimension_numbers = #tpu.dot_dimension_numbers<[1], [0], [0], [1], [0, 0, 1, 1], [], []>} : vector<384x12xf32>, vector<12x128xf32>, vector<384x128xf32> -> vector<384x128xf32>
    %c0_6 = arith.constant 0 : index
    %c0_7 = arith.constant 0 : index
    %c24 = arith.constant 24 : index
    %c0_8 = arith.constant 0 : index
    %5 = vector.load %arg2[%c0_6, %c0_7, %c24, %c0_8] : memref<1x1x432x12xf32, #tpu.memory_space<vmem>>, vector<1x1x384x12xf32>
    %6 = vector.shape_cast %5 : vector<1x1x384x12xf32> to vector<384x12xf32>
    %c1 = arith.constant 1 : index
    %c0_9 = arith.constant 0 : index
    %c0_10 = arith.constant 0 : index
    %7 = vector.load %arg3[%c1, %c0_9, %c0_10] : memref<3x12x128xf32, #tpu.memory_space<vmem>>, vector<1x12x128xf32>
    %8 = vector.shape_cast %7 : vector<1x12x128xf32> to vector<12x128xf32>
    %cst_11 = arith.constant dense<0.000000e+00> : vector<384x128xf32>
    %9 = tpu.matmul %6, %8, %cst_11 {dimension_numbers = #tpu.dot_dimension_numbers<[1], [0], [0], [1], [0, 0, 1, 1], [], []>} : vector<384x12xf32>, vector<12x128xf32>, vector<384x128xf32> -> vector<384x128xf32>
    %10 = arith.addf %4, %9 : vector<384x128xf32>
    %c0_12 = arith.constant 0 : index
    %c0_13 = arith.constant 0 : index
    %c48 = arith.constant 48 : index
    %c0_14 = arith.constant 0 : index
    %11 = vector.load %arg2[%c0_12, %c0_13, %c48, %c0_14] : memref<1x1x432x12xf32, #tpu.memory_space<vmem>>, vector<1x1x384x12xf32>
    %12 = vector.shape_cast %11 : vector<1x1x384x12xf32> to vector<384x12xf32>
    %c2 = arith.constant 2 : index
    %c0_15 = arith.constant 0 : index
    %c0_16 = arith.constant 0 : index
    %13 = vector.load %arg3[%c2, %c0_15, %c0_16] : memref<3x12x128xf32, #tpu.memory_space<vmem>>, vector<1x12x128xf32>
    %14 = vector.shape_cast %13 : vector<1x12x128xf32> to vector<12x128xf32>
    %cst_17 = arith.constant dense<0.000000e+00> : vector<384x128xf32>
    %15 = tpu.matmul %12, %14, %cst_17 {dimension_numbers = #tpu.dot_dimension_numbers<[1], [0], [0], [1], [0, 0, 1, 1], [], []>} : vector<384x12xf32>, vector<12x128xf32>, vector<384x128xf32> -> vector<384x128xf32>
    %16 = arith.addf %10, %15 : vector<384x128xf32>
    %cst_18 = arith.constant 0.235702261 : f32
    %17 = vector.broadcast %cst_18 : f32 to vector<384x128xf32>
    %18 = arith.mulf %16, %17 : vector<384x128xf32>
    %c0_19 = arith.constant 0 : index
    %c0_20 = arith.constant 0 : index
    %19 = vector.load %arg4[%c0_19, %c0_20] : memref<1x128xf32, #tpu.memory_space<vmem>>, vector<1x128xf32>
    %20 = vector.broadcast %19 : vector<1x128xf32> to vector<384x128xf32>
    %21 = arith.addf %18, %20 : vector<384x128xf32>
    %c0_21 = arith.constant 0 : index
    %c0_22 = arith.constant 0 : index
    %c0_23 = arith.constant 0 : index
    %22 = vector.load %arg5[%c0_21, %c0_22, %c0_23] : memref<1x384x128xf32, #tpu.memory_space<vmem>>, vector<1x384x128xf32>
    %23 = vector.shape_cast %22 : vector<1x384x128xf32> to vector<384x128xf32>
    %24 = vector.shape_cast %21 : vector<384x128xf32> to vector<1x384x128xf32>
    tpu.vector_store %arg5[%c0_21, %c0_22, %c0_23], %24 {strides = array<i32>} : memref<1x384x128xf32, #tpu.memory_space<vmem>>, vector<1x384x128xf32>,
    return
  }
  func.func @transform_0(%arg0: i32, %arg1: i32) -> (i32, i32, i32, i32) {
    %c0_i32 = arith.constant 0 : i32
    %c0_i32_0 = arith.constant 0 : i32
    %c0_i32_1 = arith.constant 0 : i32
    return %arg0, %arg1, %c0_i32, %c0_i32_0 : i32, i32, i32, i32
  }
  func.func @transform_1(%arg0: i32, %arg1: i32) -> (i32, i32, i32) {
    %c0_i32 = arith.constant 0 : i32
    %c0_i32_0 = arith.constant 0 : i32
    %c0_i32_1 = arith.constant 0 : i32
    %c0_i32_2 = arith.constant 0 : i32
    return %c0_i32, %c0_i32_0, %c0_i32_1 : i32, i32, i32
  }
  func.func @transform_2(%arg0: i32, %arg1: i32) -> (i32, i32) {
    %c0_i32 = arith.constant 0 : i32
    %c0_i32_0 = arith.constant 0 : i32
    %c0_i32_1 = arith.constant 0 : i32
    return %c0_i32, %c0_i32_0 : i32, i32
  }
  func.func @transform_3(%arg0: i32, %arg1: i32) -> (i32, i32, i32) {
    %c0_i32 = arith.constant 0 : i32
    %c0_i32_0 = arith.constant 0 : i32
    return %arg0, %arg1, %c0_i32 : i32, i32, i32
  }
}

</mosaic_0001>

<llo_original>
// kernel: tpu_custom_call.1
$region0: #{tpu_custom_call.1}
  #allocation0 [shape = 'u32[]', space=smem, size = 0x4, offset = 0x4, fixed_abs, tag = 'smem constant byte address 0x4 - core index']
  #allocation1 [shape = 'u32[144,128]{1,0:T(1,128)}', space=vmem, size = 0x12000, scoped, tag = 'internal scratch']
  %s0 = inlined_call_operand.vmem [shape: f32[2,1,432,12], index: 0, kind: input, shape index: {}]
  %s1 = inlined_call_operand.vmem [shape: f32[3,12,128], index: 1, kind: input, shape index: {}]
  %s2 = inlined_call_operand.vmem [shape: f32[1,128], index: 2, kind: input, shape index: {}]
  %s3 = inlined_call_operand.hbm [shape: f32[2,384,128], index: 3, kind: output, shape index: {}]
  %s4 = sld [smem:[#allocation0]]
  $region45: #{tpu_custom_call.1} parent=0
    _
  %s6 = ssub.s32 1, %s4
  %s7 = scalar_select 0, %s6, %s4
  $region1: #{tpu_custom_call.1} parent=0
    #allocation2 [shape = 'u8[393216]{0}', space=vmem, size = 0x60000, scoped, tag = 'output window, operand 0']
    #allocation3 [shape = 's32[2]{0}', space=sflag, size = 0x8, scoped, tag = 'scoped memory for tpu_custom_call.1']
    %8 = vsyncpa [#allocation3], 0
    %s9 = scalar_lea.sflag [#allocation3], 1
    %10 = vsyncpa %s9, 0
    loop: start=0, step=1, limit=4
    $region2: #{tpu_custom_call.1} parent=1 // loop_pre_header
      _
    $region3: #{tpu_custom_call.1} parent=1 // loop_header
      %s12 = sphi 0, %s16
      %p13 = scmp.ge.s32.totalorder %s12, 4
      %s19 = sphi 0, %s31
      %s20 = sphi 0, %s27
      %s21 = sphi 0, %s19
      %s22 = sphi 0, %s20
      %s23 = sphi 0, %s21
      %s24 = sphi 0, %s22
      %s36 = sphi 0, %s38
      %s39 = sphi 0, %s36
      %s40 = sphi 0, %s39
      %s56 = sphi 0, %s40
      %s60 = sphi 0, %s60
      %s62 = sphi 0, %s60
      %s63 = sphi 0, %s62
      %s77 = sphi 0, %s63
      %s81 = sphi 0, %s81
      %s83 = sphi 0, %s81
      %s84 = sphi 0, %s83
      %s98 = sphi 0, %s84
      %s106 = sphi 0, %s108
      %s109 = sphi 0, %s106
      %s110 = sphi 0, %s109
      %s126 = sphi 0, %s110
    $region4: #{tpu_custom_call.1} parent=1 // loop_header_branch
      %15 = sbr.rel (%p13) target = $region8
    $region5: #{tpu_custom_call.1} parent=1 // loop_body
      %s17 = ssub.s32 %s12, 1
      %s18 = ssub.s32 %s12, 2
      %s25 = sadd.s32 1, %s20
      %p26 = scmp.ge.s32.totalorder %s25, 1
      %s27 = scalar_select %p26, 0, %s25
      %s28 = sadd.s32 1, %s19
      %s29 = scalar_select %p26, %s28, %s19
      %p30 = scmp.ge.s32.totalorder %s29, 2
      %s31 = scalar_select %p30, 0, %s29
      %s32 = ssub.s32 %s19, %s31
      %s33 = ssub.s32 %s20, %s27
      %s34 = sor.u32 %s32, %s33
      %p35 = scmp.eq.s32.totalorder %s34, 0
      %s37 = sadd.s32 %s36, 1
      %s38 = scalar_select %p35, %s36, %s37
      %p41 = pneg %p35
      %p42 = scmp.eq.s32.totalorder %s12, 1
      %p43 = por %p41, %p42
      %p44 = scmp.ne.s32.totalorder %s36, %s39
      %p45 = scmp.eq.s32.totalorder %s12, 0
      %p46 = por %p44, %p45
      %p47 = scmp.ne.s32.totalorder %s36, %s39
      %p48 = scmp.eq.s32.totalorder %s17, 1
      %p49 = por %p47, %p48
      %p50 = scmp.ne.s32.totalorder %s39, %s40
      %p51 = scmp.eq.s32.totalorder %s17, 0
      %p52 = por %p50, %p51
      %p53 = scmp.ne.s32.totalorder %s39, %s40
      %p54 = scmp.eq.s32.totalorder %s18, 1
      %p55 = por %p53, %p54
      %p57 = scmp.ne.s32.totalorder %s40, %s56
      %p58 = scmp.eq.s32.totalorder %s18, 0
      %p59 = por %p57, %p58
      %s61 = sadd.s32 %s60, 1
      %p64 = scmp.eq.s32.totalorder %s12, 1
      %p65 = scmp.ne.s32.totalorder %s60, %s62
      %p66 = scmp.eq.s32.totalorder %s12, 0
      %p67 = por %p65, %p66
      %p68 = scmp.ne.s32.totalorder %s60, %s62
      %p69 = scmp.eq.s32.totalorder %s17, 1
      %p70 = por %p68, %p69
      %p71 = scmp.ne.s32.totalorder %s62, %s63
      %p72 = scmp.eq.s32.totalorder %s17, 0
      %p73 = por %p71, %p72
      %p74 = scmp.ne.s32.totalorder %s62, %s63
      %p75 = scmp.eq.s32.totalorder %s18, 1
      %p76 = por %p74, %p75
      %p78 = scmp.ne.s32.totalorder %s63, %s77
      %p79 = scmp.eq.s32.totalorder %s18, 0
      %p80 = por %p78, %p79
      %s82 = sadd.s32 %s81, 1
      %p85 = scmp.eq.s32.totalorder %s12, 1
      %p86 = scmp.ne.s32.totalorder %s81, %s83
      %p87 = scmp.eq.s32.totalorder %s12, 0
      %p88 = por %p86, %p87
      %p89 = scmp.ne.s32.totalorder %s81, %s83
      %p90 = scmp.eq.s32.totalorder %s17, 1
      %p91 = por %p89, %p90
      %p92 = scmp.ne.s32.totalorder %s83, %s84
      %p93 = scmp.eq.s32.totalorder %s17, 0
      %p94 = por %p92, %p93
      %p95 = scmp.ne.s32.totalorder %s83, %s84
      %p96 = scmp.eq.s32.totalorder %s18, 1
      %p97 = por %p95, %p96
      %p99 = scmp.ne.s32.totalorder %s84, %s98
      %p100 = scmp.eq.s32.totalorder %s18, 0
      %p101 = por %p99, %p100
      %s102 = ssub.s32 %s19, %s31
      %s103 = ssub.s32 %s20, %s27
      %s104 = sor.u32 %s102, %s103
      %p105 = scmp.eq.s32.totalorder %s104, 0
      %s107 = sadd.s32 %s106, 1
      %s108 = scalar_select %p105, %s106, %s107
      %p111 = pneg %p105
      %p112 = scmp.eq.s32.totalorder %s12, 1
      %p113 = por %p111, %p112
      %p114 = scmp.ne.s32.totalorder %s106, %s109
      %p115 = scmp.eq.s32.totalorder %s12, 0
      %p116 = por %p114, %p115
      %p117 = scmp.ne.s32.totalorder %s106, %s109
      %p118 = scmp.eq.s32.totalorder %s17, 1
      %p119 = por %p117, %p118
      %p120 = scmp.ne.s32.totalorder %s109, %s110
      %p121 = scmp.eq.s32.totalorder %s17, 0
      %p122 = por %p120, %p121
      %p123 = scmp.ne.s32.totalorder %s109, %s110
      %p124 = scmp.eq.s32.totalorder %s18, 1
      %p125 = por %p123, %p124
      %p127 = scmp.ne.s32.totalorder %s110, %s126
      %p128 = scmp.eq.s32.totalorder %s18, 0
      %p129 = por %p127, %p128
      %p130 = scmp.le.s32.totalorder 1, %s12
      %p131 = scmp.lt.s32.totalorder %s12, 3
      %p132 = pnand %p130, %p131
      %p133 = pneg %p132
      // Predicated region
      $region9: #{tpu_custom_call.1} parent=5 // pred_check
        _
      $region10: #{tpu_custom_call.1} parent=5 // pred_check_branch
        %135 = sbr.rel (%p132) target = $region12
      $region11: #{tpu_custom_call.1} parent=5 // pred_region
        %s136 = ssub.s32 %s12, 1
        // Predicated region
        $region13: #{tpu_custom_call.1} parent=11 // pred_check
          %p137 = pneg %p73
        $region14: #{tpu_custom_call.1} parent=11 // pred_check_branch
          %139 = sbr.rel (%p137) target = $region16
        $region15: #{tpu_custom_call.1} parent=11 // pred_region
          _
        $region16: #{tpu_custom_call.1} parent=11 // pred_fallthru
          _
        // Predicated region
        $region17: #{tpu_custom_call.1} parent=11 // pred_check
          %p140 = pneg %p94
        $region18: #{tpu_custom_call.1} parent=11 // pred_check_branch
          %142 = sbr.rel (%p140) target = $region20
        $region19: #{tpu_custom_call.1} parent=11 // pred_region
          _
        $region20: #{tpu_custom_call.1} parent=11 // pred_fallthru
          _
      $region12: #{tpu_custom_call.1} parent=5 // pred_fallthru
        _
      %p143 = scmp.lt.s32.totalorder %s12, 2
      // Predicated region
      $region21: #{tpu_custom_call.1} parent=5 // pred_check
        %p144 = pneg %p143
      $region22: #{tpu_custom_call.1} parent=5 // pred_check_branch
        %146 = sbr.rel (%p144) target = $region24
      $region23: #{tpu_custom_call.1} parent=5 // pred_region
        // Predicated region
        $region25: #{tpu_custom_call.1} parent=23 // pred_check
          %p147 = pneg %p46
        $region26: #{tpu_custom_call.1} parent=23 // pred_check_branch
          %149 = sbr.rel (%p147) target = $region28
        $region27: #{tpu_custom_call.1} parent=23 // pred_region
          %p150 = scmp.lt.s32.totalorder %s19, 1
          %s151 = scalar_select %p150, %s19, 1
          %p152 = scmp.lt.s32.totalorder %s20, 0
          %s153 = scalar_select %p152, %s20, 0
          %s154 = smul.addr %s153, 54
          %s155 = smul.addr %s151, 54
          %s156 = sadd.s32 %s154, %s155
          %s157 = smul.addr %s156, 8
          %s158 = scalar_lea.vmem %s0, %s157
        $region28: #{tpu_custom_call.1} parent=23 // pred_fallthru
          _
      $region24: #{tpu_custom_call.1} parent=5 // pred_fallthru
        _
      %p159 = scmp.le.s32.totalorder 1, %s12
      %p160 = scmp.lt.s32.totalorder %s12, 3
      %p161 = pnand %p159, %p160
      %p162 = pneg %p161
      // Predicated region
      $region29: #{tpu_custom_call.1} parent=5 // pred_check
        _
      $region30: #{tpu_custom_call.1} parent=5 // pred_check_branch
        %164 = sbr.rel (%p161) target = $region32
      $region31: #{tpu_custom_call.1} parent=5 // pred_region
        %s165 = ssub.s32 %s12, 1
        %p166 = scmp.lt.s32.totalorder %s21, 1
        %s167 = scalar_select %p166, %s21, 1
        %p168 = scmp.lt.s32.totalorder %s22, 0
        %s169 = scalar_select %p168, %s22, 0
        %s170 = smul.addr %s169, 54
        %s171 = smul.addr %s167, 54
        %s172 = sadd.s32 %s170, %s171
        %s173 = smul.addr %s172, 8
        %s174 = scalar_lea.vmem %s0, %s173
        %p175 = pneg %p52
        %p176 = pneg %p49
        %p177 = pneg %p73
        %p178 = pneg %p70
        %p179 = pneg %p94
        %p180 = pneg %p91
        %p181 = pneg %p122
        %p182 = pneg %p119
        %s183 = sand.u32 %s109, 1
        %s184 = scalar_lea.sflag [#allocation3], %s183
        %s185 = sand.u32 %s109, 1
        %s186 = smul.addr %s185, 384
        %s187 = scalar_lea.vmem [#allocation2], %s186
        %p188 = scmp.lt.s32.totalorder %s21, 1
        %s189 = scalar_select %p188, %s21, 1
        %p190 = scmp.lt.s32.totalorder %s22, 0
        %s191 = scalar_select %p190, %s22, 0
        %s192 = smul.addr %s191, 54
        %s193 = smul.addr %s189, 54
        %s194 = sadd.s32 %s192, %s193
        %s195 = smul.addr %s194, 8
        %s196 = scalar_lea.vmem %s0, %s195
        %s197 = smul.u32 48, %s22
        %v198 = vld [vmem:[%s196] sm:$0xff]
        %v199 = vld [vmem:[%s196 + $0x8] sm:$0xff]
        %v200 = vld [vmem:[%s196 + $0x10] sm:$0xff]
        %v201 = vld [vmem:[%s196 + $0x18] sm:$0xff]
        %v202 = vld [vmem:[%s196 + $0x20] sm:$0xff]
        %v203 = vld [vmem:[%s196 + $0x28] sm:$0xff]
        %v204 = vld [vmem:[%s196 + $0x30] sm:$0xff]
        %v205 = vld [vmem:[%s196 + $0x38] sm:$0xff]
        %v206 = vld [vmem:[%s196 + $0x40] sm:$0xff]
        %v207 = vld [vmem:[%s196 + $0x48] sm:$0xff]
        %v208 = vld [vmem:[%s196 + $0x50] sm:$0xff]
        %v209 = vld [vmem:[%s196 + $0x58] sm:$0xff]
        %v210 = vld [vmem:[%s196 + $0x60] sm:$0xff]
        %v211 = vld [vmem:[%s196 + $0x68] sm:$0xff]
        %v212 = vld [vmem:[%s196 + $0x70] sm:$0xff]
        %v213 = vld [vmem:[%s196 + $0x78] sm:$0xff]
        %v214 = vld [vmem:[%s196 + $0x80] sm:$0xff]
        %v215 = vld [vmem:[%s196 + $0x88] sm:$0xff]
        %v216 = vld [vmem:[%s196 + $0x90] sm:$0xff]
        %v217 = vld [vmem:[%s196 + $0x98] sm:$0xff]
        %v218 = vld [vmem:[%s196 + $0xa0] sm:$0xff]
        %v219 = vld [vmem:[%s196 + $0xa8] sm:$0xff]
        %v220 = vld [vmem:[%s196 + $0xb0] sm:$0xff]
        %v221 = vld [vmem:[%s196 + $0xb8] sm:$0xff]
        %v222 = vld [vmem:[%s196 + $0xc0] sm:$0xff]
        %v223 = vld [vmem:[%s196 + $0xc8] sm:$0xff]
        %v224 = vld [vmem:[%s196 + $0xd0] sm:$0xff]
        %v225 = vld [vmem:[%s196 + $0xd8] sm:$0xff]
        %v226 = vld [vmem:[%s196 + $0xe0] sm:$0xff]
        %v227 = vld [vmem:[%s196 + $0xe8] sm:$0xff]
        %v228 = vld [vmem:[%s196 + $0xf0] sm:$0xff]
        %v229 = vld [vmem:[%s196 + $0xf8] sm:$0xff]
        %v230 = vld [vmem:[%s196 + $0x100] sm:$0xff]
        %v231 = vld [vmem:[%s196 + $0x108] sm:$0xff]
        %v232 = vld [vmem:[%s196 + $0x110] sm:$0xff]
        %v233 = vld [vmem:[%s196 + $0x118] sm:$0xff]
        %v234 = vld [vmem:[%s196 + $0x120] sm:$0xff]
        %v235 = vld [vmem:[%s196 + $0x128] sm:$0xff]
        %v236 = vld [vmem:[%s196 + $0x130] sm:$0xff]
        %v237 = vld [vmem:[%s196 + $0x138] sm:$0xff]
        %v238 = vld [vmem:[%s196 + $0x140] sm:$0xff]
        %v239 = vld [vmem:[%s196 + $0x148] sm:$0xff]
        %v240 = vld [vmem:[%s196 + $0x150] sm:$0xff]
        %v241 = vld [vmem:[%s196 + $0x158] sm:$0xff]
        %v242 = vld [vmem:[%s196 + $0x160] sm:$0xff]
        %v243 = vld [vmem:[%s196 + $0x168] sm:$0xff]
        %v244 = vld [vmem:[%s196 + $0x170] sm:$0xff]
        %v245 = vld [vmem:[%s196 + $0x178] sm:$0xff]
        %v246 = vld [vmem:[%s1] sm:$0xff]
        %v247 = vld [vmem:[%s1 + $0x8] sm:$0xf]
        %v248 = vld [vmem:[%s196 + $0x180] sm:$0xff]
        %v249 = vld [vmem:[%s196 + $0x188] sm:$0xff]
        %v250 = vld [vmem:[%s196 + $0x190] sm:$0xff]
        %s251 = scalar_lea.vmem %s1, 16
        %v252 = vld [vmem:[%s251] sm:$0xff]
        %v253 = vld [vmem:[%s251 + $0x8] sm:$0xf]
        %vm254 = vcmask 97280
        %v256 = vsel %vm254, %v201, 0
        %v259 = vsel %vm254, %v202, 0
        %v262 = vsel %vm254, %v203, 0
        %v265 = vsel %vm254, %v204, 0
        %v268 = vsel %vm254, %v205, 0
        %v271 = vsel %vm254, %v206, 0
        %v274 = vsel %vm254, %v207, 0
        %v277 = vsel %vm254, %v208, 0
        %v280 = vsel %vm254, %v209, 0
        %v283 = vsel %vm254, %v210, 0
        %v286 = vsel %vm254, %v211, 0
        %v289 = vsel %vm254, %v212, 0
        %v292 = vsel %vm254, %v213, 0
        %v295 = vsel %vm254, %v214, 0
        %v298 = vsel %vm254, %v215, 0
        %v301 = vsel %vm254, %v216, 0
        %v304 = vsel %vm254, %v217, 0
        %v307 = vsel %vm254, %v218, 0
        %v310 = vsel %vm254, %v219, 0
        %v313 = vsel %vm254, %v220, 0
        %v316 = vsel %vm254, %v221, 0
        %v319 = vsel %vm254, %v222, 0
        %v322 = vsel %vm254, %v223, 0
        %v325 = vsel %vm254, %v224, 0
        %v328 = vsel %vm254, %v225, 0
        %v331 = vsel %vm254, %v226, 0
        %v334 = vsel %vm254, %v227, 0
        %v337 = vsel %vm254, %v228, 0
        %v340 = vsel %vm254, %v229, 0
        %v343 = vsel %vm254, %v230, 0
        %v346 = vsel %vm254, %v231, 0
        %v349 = vsel %vm254, %v232, 0
        %v352 = vsel %vm254, %v233, 0
        %v355 = vsel %vm254, %v234, 0
        %v358 = vsel %vm254, %v235, 0
        %v361 = vsel %vm254, %v236, 0
        %v364 = vsel %vm254, %v237, 0
        %v367 = vsel %vm254, %v238, 0
        %v370 = vsel %vm254, %v239, 0
        %v373 = vsel %vm254, %v240, 0
        %v376 = vsel %vm254, %v241, 0
        %v379 = vsel %vm254, %v242, 0
        %v382 = vsel %vm254, %v243, 0
        %v385 = vsel %vm254, %v244, 0
        %v388 = vsel %vm254, %v245, 0
        %v391 = vsel %vm254, %v248, 0
        %v394 = vsel %vm254, %v249, 0
        %v397 = vsel %vm254, %v250, 0
        %vm399 = vcmask 1043456
        %v401 = vsel %vm399, %v253, 0
        %403 = vmatprep.subr.mxu0 0.0
        %404 = vmatpush1.msra.mxu0 0.0
        %405 = vmatprep.subr.mxu0 0.0
        %406 = vmatpush1.msra.mxu0 0.0
        %407 = vmatprep.subr.mxu0 0.0
        %408 = vmatpush1.msra.mxu0 0.0
        %409 = vmatprep.subr.mxu0 0.0
        %410 = vmatpush1.msra.mxu0 0.0
        %411 = vmatprep.subr.mxu0 0.0
        %412 = vmatpush1.msra.mxu0 0.0
        %413 = vmatprep.subr.mxu0 0.0
        %414 = vmatpush1.msra.mxu0 0.0
        %415 = vmatprep.subr.mxu0 0.0
        %416 = vmatpush1.msra.mxu0 0.0
        %417 = vmatprep.subr.mxu0 0.0
        %418 = vmatpush1.msra.mxu0 0.0
        %419 = vmatprep.subr.mxu0 0.0
        %420 = vmatpush1.msra.mxu0 0.0
        %421 = vmatprep.subr.mxu0 0.0
        %422 = vmatpush1.msra.mxu0 0.0
        %423 = vmatprep.subr.mxu0 0.0
        %424 = vmatpush1.msra.mxu0 0.0
        %425 = vmatprep.subr.mxu0 0.0
        %426 = vmatpush1.msra.mxu0 0.0
        %427 = vmatprep.subr.mxu0 0.0
        %428 = vmatpush1.msra.mxu0 0.0
        %429 = vmatprep.subr.mxu0 0.0
        %430 = vmatpush1.msra.mxu0 0.0
        %431 = vmatprep.subr.mxu0 0.0
        %432 = vmatpush1.msra.mxu0 %v401
        %433 = vmatprep.subr.mxu0 0.0
        %434 = vmatpush1.msra.mxu0 %v252
        %435 = vmatprep.subr.mxu0 0.0
        %436 = vmatpush2.msra.mxu0 0.0
        %437 = vmatprep.subr.mxu0 0.0
        %438 = vmatpush2.msra.mxu0 0.0
        %439 = vmatprep.subr.mxu0 0.0
        %440 = vmatpush2.msra.mxu0 0.0
        %441 = vmatprep.subr.mxu0 0.0
        %442 = vmatpush2.msra.mxu0 0.0
        %443 = vmatprep.subr.mxu0 0.0
        %444 = vmatpush2.msra.mxu0 0.0
        %445 = vmatprep.subr.mxu0 0.0
        %446 = vmatpush2.msra.mxu0 0.0
        %447 = vmatprep.subr.mxu0 0.0
        %448 = vmatpush2.msra.mxu0 0.0
        %449 = vmatprep.subr.mxu0 0.0
        %450 = vmatpush2.msra.mxu0 0.0
        %451 = vmatprep.subr.mxu0 0.0
        %452 = vmatpush2.msra.mxu0 0.0
        %453 = vmatprep.subr.mxu0 0.0
        %454 = vmatpush2.msra.mxu0 0.0
        %455 = vmatprep.subr.mxu0 0.0
        %456 = vmatpush2.msra.mxu0 0.0
        %457 = vmatprep.subr.mxu0 0.0
        %458 = vmatpush2.msra.mxu0 0.0
        %459 = vmatprep.subr.mxu0 0.0
        %460 = vmatpush2.msra.mxu0 0.0
        %461 = vmatprep.subr.mxu0 0.0
        %462 = vmatpush2.msra.mxu0 0.0
        %463 = vmatprep.subr.mxu0 0.0
        %464 = vmatpush2.msra.mxu0 0.0
        %465 = vmatprep.subr.mxu0 0.0
        %466 = vmatpush2.msra.mxu0 0.0
        %467 = vmatprep.mubr.f32.mxu0 0.0
        %468 = vmatmul.mubr.f32.gmra.mxu0 %v256
        %v469 = vpop.f32.mrf.mxu0
        %v470 = vadd.f32 0.0, %v469
        %v471 = vpop.f32.mrf.mxu0
        %472 = vmatprep.mubr.f32.mxu0 0.0
        %473 = vmatmul.mubr.f32.gmra.mxu0 %v259
        %v474 = vpop.f32.mrf.mxu0
        %v475 = vadd.f32 0.0, %v474
        %v476 = vpop.f32.mrf.mxu0
        %477 = vmatprep.mubr.f32.mxu0 0.0
        %478 = vmatmul.mubr.f32.gmra.mxu0 %v262
        %v479 = vpop.f32.mrf.mxu0
        %v480 = vadd.f32 0.0, %v479
        %v481 = vpop.f32.mrf.mxu0
        %482 = vmatprep.mubr.f32.mxu0 0.0
        %483 = vmatmul.mubr.f32.gmra.mxu0 %v265
        %v484 = vpop.f32.mrf.mxu0
        %v485 = vadd.f32 0.0, %v484
        %v486 = vpop.f32.mrf.mxu0
        %487 = vmatprep.mubr.f32.mxu0 0.0
        %488 = vmatmul.mubr.f32.gmra.mxu0 %v268
        %v489 = vpop.f32.mrf.mxu0
        %v490 = vadd.f32 0.0, %v489
        %v491 = vpop.f32.mrf.mxu0
        %492 = vmatprep.mubr.f32.mxu0 0.0
        %493 = vmatmul.mubr.f32.gmra.mxu0 %v271
        %v494 = vpop.f32.mrf.mxu0
        %v495 = vadd.f32 0.0, %v494
        %v496 = vpop.f32.mrf.mxu0
        %497 = vmatprep.mubr.f32.mxu0 0.0
        %498 = vmatmul.mubr.f32.gmra.mxu0 %v274
        %v499 = vpop.f32.mrf.mxu0
        %v500 = vadd.f32 0.0, %v499
        %v501 = vpop.f32.mrf.mxu0
        %502 = vmatprep.mubr.f32.mxu0 0.0
        %503 = vmatmul.mubr.f32.gmra.mxu0 %v277
        %v504 = vpop.f32.mrf.mxu0
        %v505 = vadd.f32 0.0, %v504
        %v506 = vpop.f32.mrf.mxu0
        %507 = vmatprep.mubr.f32.mxu0 0.0
        %508 = vmatmul.mubr.f32.gmra.mxu0 %v280
        %v509 = vpop.f32.mrf.mxu0
        %v510 = vadd.f32 0.0, %v509
        %v511 = vpop.f32.mrf.mxu0
        %512 = vmatprep.mubr.f32.mxu0 0.0
        %513 = vmatmul.mubr.f32.gmra.mxu0 %v283
        %v514 = vpop.f32.mrf.mxu0
        %v515 = vadd.f32 0.0, %v514
        %v516 = vpop.f32.mrf.mxu0
        %517 = vmatprep.mubr.f32.mxu0 0.0
        %518 = vmatmul.mubr.f32.gmra.mxu0 %v286
        %v519 = vpop.f32.mrf.mxu0
        %v520 = vadd.f32 0.0, %v519
        %v521 = vpop.f32.mrf.mxu0
        %522 = vmatprep.mubr.f32.mxu0 0.0
        %523 = vmatmul.mubr.f32.gmra.mxu0 %v289
        %v524 = vpop.f32.mrf.mxu0
        %v525 = vadd.f32 0.0, %v524
        %v526 = vpop.f32.mrf.mxu0
        %527 = vmatprep.mubr.f32.mxu0 0.0
        %528 = vmatmul.mubr.f32.gmra.mxu0 %v292
        %v529 = vpop.f32.mrf.mxu0
        %v530 = vadd.f32 0.0, %v529
        %v531 = vpop.f32.mrf.mxu0
        %532 = vmatprep.mubr.f32.mxu0 0.0
        %533 = vmatmul.mubr.f32.gmra.mxu0 %v295
        %v534 = vpop.f32.mrf.mxu0
        %v535 = vadd.f32 0.0, %v534
        %v536 = vpop.f32.mrf.mxu0
        %537 = vmatprep.mubr.f32.mxu0 0.0
        %538 = vmatmul.mubr.f32.gmra.mxu0 %v298
        %v539 = vpop.f32.mrf.mxu0
        %v540 = vadd.f32 0.0, %v539
        %v541 = vpop.f32.mrf.mxu0
        %542 = vmatprep.mubr.f32.mxu0 0.0
        %543 = vmatmul.mubr.f32.gmra.mxu0 %v301
        %v544 = vpop.f32.mrf.mxu0
        %v545 = vadd.f32 0.0, %v544
        %v546 = vpop.f32.mrf.mxu0
        %547 = vmatprep.mubr.f32.mxu0 0.0
        %548 = vmatmul.mubr.f32.gmra.mxu0 %v304
        %v549 = vpop.f32.mrf.mxu0
        %v550 = vadd.f32 0.0, %v549
        %v551 = vpop.f32.mrf.mxu0
        %552 = vmatprep.mubr.f32.mxu0 0.0
        %553 = vmatmul.mubr.f32.gmra.mxu0 %v307
        %v554 = vpop.f32.mrf.mxu0
        %v555 = vadd.f32 0.0, %v554
        %v556 = vpop.f32.mrf.mxu0
        %557 = vmatprep.mubr.f32.mxu0 0.0
        %558 = vmatmul.mubr.f32.gmra.mxu0 %v310
        %v559 = vpop.f32.mrf.mxu0
        %v560 = vadd.f32 0.0, %v559
        %v561 = vpop.f32.mrf.mxu0
        %562 = vmatprep.mubr.f32.mxu0 0.0
        %563 = vmatmul.mubr.f32.gmra.mxu0 %v313
        %v564 = vpop.f32.mrf.mxu0
        %v565 = vadd.f32 0.0, %v564
        %v566 = vpop.f32.mrf.mxu0
        %567 = vmatprep.mubr.f32.mxu0 0.0
        %568 = vmatmul.mubr.f32.gmra.mxu0 %v316
        %v569 = vpop.f32.mrf.mxu0
        %v570 = vadd.f32 0.0, %v569
        %v571 = vpop.f32.mrf.mxu0
        %572 = vmatprep.mubr.f32.mxu0 0.0
        %573 = vmatmul.mubr.f32.gmra.mxu0 %v319
        %v574 = vpop.f32.mrf.mxu0
        %v575 = vadd.f32 0.0, %v574
        %v576 = vpop.f32.mrf.mxu0
        %577 = vmatprep.mubr.f32.mxu0 0.0
        %578 = vmatmul.mubr.f32.gmra.mxu0 %v322
        %v579 = vpop.f32.mrf.mxu0
        %v580 = vadd.f32 0.0, %v579
        %v581 = vpop.f32.mrf.mxu0
        %582 = vmatprep.mubr.f32.mxu0 0.0
        %583 = vmatmul.mubr.f32.gmra.mxu0 %v325
        %v584 = vpop.f32.mrf.mxu0
        %v585 = vadd.f32 0.0, %v584
        %v586 = vpop.f32.mrf.mxu0
        %587 = vmatprep.mubr.f32.mxu0 0.0
        %588 = vmatmul.mubr.f32.gmra.mxu0 %v328
        %v589 = vpop.f32.mrf.mxu0
        %v590 = vadd.f32 0.0, %v589
        %v591 = vpop.f32.mrf.mxu0
        %592 = vmatprep.mubr.f32.mxu0 0.0
        %593 = vmatmul.mubr.f32.gmra.mxu0 %v331
        %v594 = vpop.f32.mrf.mxu0
        %v595 = vadd.f32 0.0, %v594
        %v596 = vpop.f32.mrf.mxu0
        %597 = vmatprep.mubr.f32.mxu0 0.0
        %598 = vmatmul.mubr.f32.gmra.mxu0 %v334
        %v599 = vpop.f32.mrf.mxu0
        %v600 = vadd.f32 0.0, %v599
        %v601 = vpop.f32.mrf.mxu0
        %602 = vmatprep.mubr.f32.mxu0 0.0
        %603 = vmatmul.mubr.f32.gmra.mxu0 %v337
        %v604 = vpop.f32.mrf.mxu0
        %v605 = vadd.f32 0.0, %v604
        %v606 = vpop.f32.mrf.mxu0
        %607 = vmatprep.mubr.f32.mxu0 0.0
        %608 = vmatmul.mubr.f32.gmra.mxu0 %v340
        %v609 = vpop.f32.mrf.mxu0
        %v610 = vadd.f32 0.0, %v609
        %v611 = vpop.f32.mrf.mxu0
        %612 = vmatprep.mubr.f32.mxu0 0.0
        %613 = vmatmul.mubr.f32.gmra.mxu0 %v343
        %v614 = vpop.f32.mrf.mxu0
        %v615 = vadd.f32 0.0, %v614
        %v616 = vpop.f32.mrf.mxu0
        %617 = vmatprep.mubr.f32.mxu0 0.0
        %618 = vmatmul.mubr.f32.gmra.mxu0 %v346
        %v619 = vpop.f32.mrf.mxu0
        %v620 = vadd.f32 0.0, %v619
        %v621 = vpop.f32.mrf.mxu0
        %622 = vmatprep.mubr.f32.mxu0 0.0
        %623 = vmatmul.mubr.f32.gmra.mxu0 %v349
        %v624 = vpop.f32.mrf.mxu0
        %v625 = vadd.f32 0.0, %v624
        %v626 = vpop.f32.mrf.mxu0
        %627 = vmatprep.mubr.f32.mxu0 0.0
        %628 = vmatmul.mubr.f32.gmra.mxu0 %v352
        %v629 = vpop.f32.mrf.mxu0
        %v630 = vadd.f32 0.0, %v629
        %v631 = vpop.f32.mrf.mxu0
        %632 = vmatprep.mubr.f32.mxu0 0.0
        %633 = vmatmul.mubr.f32.gmra.mxu0 %v355
        %v634 = vpop.f32.mrf.mxu0
        %v635 = vadd.f32 0.0, %v634
        %v636 = vpop.f32.mrf.mxu0
        %637 = vmatprep.mubr.f32.mxu0 0.0
        %638 = vmatmul.mubr.f32.gmra.mxu0 %v358
        %v639 = vpop.f32.mrf.mxu0
        %v640 = vadd.f32 0.0, %v639
        %v641 = vpop.f32.mrf.mxu0
        %642 = vmatprep.mubr.f32.mxu0 0.0
        %643 = vmatmul.mubr.f32.gmra.mxu0 %v361
        %v644 = vpop.f32.mrf.mxu0
        %v645 = vadd.f32 0.0, %v644
        %v646 = vpop.f32.mrf.mxu0
        %647 = vmatprep.mubr.f32.mxu0 0.0
        %648 = vmatmul.mubr.f32.gmra.mxu0 %v364
        %v649 = vpop.f32.mrf.mxu0
        %v650 = vadd.f32 0.0, %v649
        %v651 = vpop.f32.mrf.mxu0
        %652 = vmatprep.mubr.f32.mxu0 0.0
        %653 = vmatmul.mubr.f32.gmra.mxu0 %v367
        %v654 = vpop.f32.mrf.mxu0
        %v655 = vadd.f32 0.0, %v654
        %v656 = vpop.f32.mrf.mxu0
        %657 = vmatprep.mubr.f32.mxu0 0.0
        %658 = vmatmul.mubr.f32.gmra.mxu0 %v370
        %v659 = vpop.f32.mrf.mxu0
        %v660 = vadd.f32 0.0, %v659
        %v661 = vpop.f32.mrf.mxu0
        %662 = vmatprep.mubr.f32.mxu0 0.0
        %663 = vmatmul.mubr.f32.gmra.mxu0 %v373
        %v664 = vpop.f32.mrf.mxu0
        %v665 = vadd.f32 0.0, %v664
        %v666 = vpop.f32.mrf.mxu0
        %667 = vmatprep.mubr.f32.mxu0 0.0
        %668 = vmatmul.mubr.f32.gmra.mxu0 %v376
        %v669 = vpop.f32.mrf.mxu0
        %v670 = vadd.f32 0.0, %v669
        %v671 = vpop.f32.mrf.mxu0
        %672 = vmatprep.mubr.f32.mxu0 0.0
        %673 = vmatmul.mubr.f32.gmra.mxu0 %v379
        %v674 = vpop.f32.mrf.mxu0
        %v675 = vadd.f32 0.0, %v674
        %v676 = vpop.f32.mrf.mxu0
        %677 = vmatprep.mubr.f32.mxu0 0.0
        %678 = vmatmul.mubr.f32.gmra.mxu0 %v382
        %v679 = vpop.f32.mrf.mxu0
        %v680 = vadd.f32 0.0, %v679
        %v681 = vpop.f32.mrf.mxu0
        %682 = vmatprep.mubr.f32.mxu0 0.0
        %683 = vmatmul.mubr.f32.gmra.mxu0 %v385
        %v684 = vpop.f32.mrf.mxu0
        %v685 = vadd.f32 0.0, %v684
        %v686 = vpop.f32.mrf.mxu0
        %687 = vmatprep.mubr.f32.mxu0 0.0
        %688 = vmatmul.mubr.f32.gmra.mxu0 %v388
        %v689 = vpop.f32.mrf.mxu0
        %v690 = vadd.f32 0.0, %v689
        %v691 = vpop.f32.mrf.mxu0
        %692 = vmatprep.mubr.f32.mxu0 0.0
        %693 = vmatmul.mubr.f32.gmra.mxu0 %v391
        %v694 = vpop.f32.mrf.mxu0
        %v695 = vadd.f32 0.0, %v694
        %v696 = vpop.f32.mrf.mxu0
        %697 = vmatprep.mubr.f32.mxu0 0.0
        %698 = vmatmul.mubr.f32.gmra.mxu0 %v394
        %v699 = vpop.f32.mrf.mxu0
        %v700 = vadd.f32 0.0, %v699
        %v701 = vpop.f32.mrf.mxu0
        %702 = vmatprep.mubr.f32.mxu0 0.0
        %703 = vmatmul.mubr.f32.gmra.mxu0 %v397
        %v704 = vpop.f32.mrf.mxu0
        %v705 = vadd.f32 0.0, %v704
        %v706 = vpop.f32.mrf.mxu0
        %707 = vdwg.mxu0
        %v709 = vsel %vm254, %v198, 0
        %v712 = vsel %vm254, %v199, 0
        %v715 = vsel %vm254, %v200, 0
        %v718 = vsel %vm399, %v247, 0
        %720 = vmatprep.subr.mxu0 0.0
        %721 = vmatpush1.msra.mxu0 0.0
        %722 = vmatprep.subr.mxu0 0.0
        %723 = vmatpush1.msra.mxu0 0.0
        %724 = vmatprep.subr.mxu0 0.0
        %725 = vmatpush1.msra.mxu0 0.0
        %726 = vmatprep.subr.mxu0 0.0
        %727 = vmatpush1.msra.mxu0 0.0
        %728 = vmatprep.subr.mxu0 0.0
        %729 = vmatpush1.msra.mxu0 0.0
        %730 = vmatprep.subr.mxu0 0.0
        %731 = vmatpush1.msra.mxu0 0.0
        %732 = vmatprep.subr.mxu0 0.0
        %733 = vmatpush1.msra.mxu0 0.0
        %734 = vmatprep.subr.mxu0 0.0
        %735 = vmatpush1.msra.mxu0 0.0
        %736 = vmatprep.subr.mxu0 0.0
        %737 = vmatpush1.msra.mxu0 0.0
        %738 = vmatprep.subr.mxu0 0.0
        %739 = vmatpush1.msra.mxu0 0.0
        %740 = vmatprep.subr.mxu0 0.0
        %741 = vmatpush1.msra.mxu0 0.0
        %742 = vmatprep.subr.mxu0 0.0
        %743 = vmatpush1.msra.mxu0 0.0
        %744 = vmatprep.subr.mxu0 0.0
        %745 = vmatpush1.msra.mxu0 0.0
        %746 = vmatprep.subr.mxu0 0.0
        %747 = vmatpush1.msra.mxu0 0.0
        %748 = vmatprep.subr.mxu0 0.0
        %749 = vmatpush1.msra.mxu0 %v718
        %750 = vmatprep.subr.mxu0 0.0
        %751 = vmatpush1.msra.mxu0 %v246
        %752 = vmatprep.subr.mxu0 0.0
        %753 = vmatpush2.msra.mxu0 0.0
        %754 = vmatprep.subr.mxu0 0.0
        %755 = vmatpush2.msra.mxu0 0.0
        %756 = vmatprep.subr.mxu0 0.0
        %757 = vmatpush2.msra.mxu0 0.0
        %758 = vmatprep.subr.mxu0 0.0
        %759 = vmatpush2.msra.mxu0 0.0
        %760 = vmatprep.subr.mxu0 0.0
        %761 = vmatpush2.msra.mxu0 0.0
        %762 = vmatprep.subr.mxu0 0.0
        %763 = vmatpush2.msra.mxu0 0.0
        %764 = vmatprep.subr.mxu0 0.0
        %765 = vmatpush2.msra.mxu0 0.0
        %766 = vmatprep.subr.mxu0 0.0
        %767 = vmatpush2.msra.mxu0 0.0
        %768 = vmatprep.subr.mxu0 0.0
        %769 = vmatpush2.msra.mxu0 0.0
        %770 = vmatprep.subr.mxu0 0.0
        %771 = vmatpush2.msra.mxu0 0.0
        %772 = vmatprep.subr.mxu0 0.0
        %773 = vmatpush2.msra.mxu0 0.0
        %774 = vmatprep.subr.mxu0 0.0
        %775 = vmatpush2.msra.mxu0 0.0
        %776 = vmatprep.subr.mxu0 0.0
        %777 = vmatpush2.msra.mxu0 0.0
        %778 = vmatprep.subr.mxu0 0.0
        %779 = vmatpush2.msra.mxu0 0.0
        %780 = vmatprep.subr.mxu0 0.0
        %781 = vmatpush2.msra.mxu0 0.0
        %782 = vmatprep.subr.mxu0 0.0
        %783 = vmatpush2.msra.mxu0 0.0
        %784 = vmatprep.mubr.f32.mxu0 0.0
        %785 = vmatmul.mubr.f32.gmra.mxu0 %v709
        %v786 = vpop.f32.mrf.mxu0
        %v787 = vadd.f32 %v470, %v786
        %v788 = vpop.f32.mrf.mxu0
        %789 = vmatprep.mubr.f32.mxu0 0.0
        %790 = vmatmul.mubr.f32.gmra.mxu0 %v712
        %v791 = vpop.f32.mrf.mxu0
        %v792 = vadd.f32 %v475, %v791
        %v793 = vpop.f32.mrf.mxu0
        %794 = vmatprep.mubr.f32.mxu0 0.0
        %795 = vmatmul.mubr.f32.gmra.mxu0 %v715
        %v796 = vpop.f32.mrf.mxu0
        %v797 = vadd.f32 %v480, %v796
        %v798 = vpop.f32.mrf.mxu0
        %799 = vmatprep.mubr.f32.mxu0 0.0
        %800 = vmatmul.mubr.f32.gmra.mxu0 %v256
        %v801 = vpop.f32.mrf.mxu0
        %v802 = vadd.f32 %v485, %v801
        %v803 = vpop.f32.mrf.mxu0
        %804 = vmatprep.mubr.f32.mxu0 0.0
        %805 = vmatmul.mubr.f32.gmra.mxu0 %v259
        %v806 = vpop.f32.mrf.mxu0
        %v807 = vadd.f32 %v490, %v806
        %v808 = vpop.f32.mrf.mxu0
        %809 = vmatprep.mubr.f32.mxu0 0.0
        %810 = vmatmul.mubr.f32.gmra.mxu0 %v262
        %v811 = vpop.f32.mrf.mxu0
        %v812 = vadd.f32 %v495, %v811
        %v813 = vpop.f32.mrf.mxu0
        %814 = vmatprep.mubr.f32.mxu0 0.0
        %815 = vmatmul.mubr.f32.gmra.mxu0 %v265
        %v816 = vpop.f32.mrf.mxu0
        %v817 = vadd.f32 %v500, %v816
        %v818 = vpop.f32.mrf.mxu0
        %819 = vmatprep.mubr.f32.mxu0 0.0
        %820 = vmatmul.mubr.f32.gmra.mxu0 %v268
        %v821 = vpop.f32.mrf.mxu0
        %v822 = vadd.f32 %v505, %v821
        %v823 = vpop.f32.mrf.mxu0
        %824 = vmatprep.mubr.f32.mxu0 0.0
        %825 = vmatmul.mubr.f32.gmra.mxu0 %v271
        %v826 = vpop.f32.mrf.mxu0
        %v827 = vadd.f32 %v510, %v826
        %v828 = vpop.f32.mrf.mxu0
        %829 = vmatprep.mubr.f32.mxu0 0.0
        %830 = vmatmul.mubr.f32.gmra.mxu0 %v274
        %v831 = vpop.f32.mrf.mxu0
        %v832 = vadd.f32 %v515, %v831
        %v833 = vpop.f32.mrf.mxu0
        %834 = vmatprep.mubr.f32.mxu0 0.0
        %835 = vmatmul.mubr.f32.gmra.mxu0 %v277
        %v836 = vpop.f32.mrf.mxu0
        %v837 = vadd.f32 %v520, %v836
        %v838 = vpop.f32.mrf.mxu0
        %839 = vmatprep.mubr.f32.mxu0 0.0
        %840 = vmatmul.mubr.f32.gmra.mxu0 %v280
        %v841 = vpop.f32.mrf.mxu0
        %v842 = vadd.f32 %v525, %v841
        %v843 = vpop.f32.mrf.mxu0
        %844 = vmatprep.mubr.f32.mxu0 0.0
        %845 = vmatmul.mubr.f32.gmra.mxu0 %v283
        %v846 = vpop.f32.mrf.mxu0
        %v847 = vadd.f32 %v530, %v846
        %v848 = vpop.f32.mrf.mxu0
        %849 = vmatprep.mubr.f32.mxu0 0.0
        %850 = vmatmul.mubr.f32.gmra.mxu0 %v286
        %v851 = vpop.f32.mrf.mxu0
        %v852 = vadd.f32 %v535, %v851
        %v853 = vpop.f32.mrf.mxu0
        %854 = vmatprep.mubr.f32.mxu0 0.0
        %855 = vmatmul.mubr.f32.gmra.mxu0 %v289
        %v856 = vpop.f32.mrf.mxu0
        %v857 = vadd.f32 %v540, %v856
        %v858 = vpop.f32.mrf.mxu0
        %859 = vmatprep.mubr.f32.mxu0 0.0
        %860 = vmatmul.mubr.f32.gmra.mxu0 %v292
        %v861 = vpop.f32.mrf.mxu0
        %v862 = vadd.f32 %v545, %v861
        %v863 = vpop.f32.mrf.mxu0
        %864 = vmatprep.mubr.f32.mxu0 0.0
        %865 = vmatmul.mubr.f32.gmra.mxu0 %v295
        %v866 = vpop.f32.mrf.mxu0
        %v867 = vadd.f32 %v550, %v866
        %v868 = vpop.f32.mrf.mxu0
        %869 = vmatprep.mubr.f32.mxu0 0.0
        %870 = vmatmul.mubr.f32.gmra.mxu0 %v298
        %v871 = vpop.f32.mrf.mxu0
        %v872 = vadd.f32 %v555, %v871
        %v873 = vpop.f32.mrf.mxu0
        %874 = vmatprep.mubr.f32.mxu0 0.0
        %875 = vmatmul.mubr.f32.gmra.mxu0 %v301
        %v876 = vpop.f32.mrf.mxu0
        %v877 = vadd.f32 %v560, %v876
        %v878 = vpop.f32.mrf.mxu0
        %879 = vmatprep.mubr.f32.mxu0 0.0
        %880 = vmatmul.mubr.f32.gmra.mxu0 %v304
        %v881 = vpop.f32.mrf.mxu0
        %v882 = vadd.f32 %v565, %v881
        %v883 = vpop.f32.mrf.mxu0
        %884 = vmatprep.mubr.f32.mxu0 0.0
        %885 = vmatmul.mubr.f32.gmra.mxu0 %v307
        %v886 = vpop.f32.mrf.mxu0
        %v887 = vadd.f32 %v570, %v886
        %v888 = vpop.f32.mrf.mxu0
        %889 = vmatprep.mubr.f32.mxu0 0.0
        %890 = vmatmul.mubr.f32.gmra.mxu0 %v310
        %v891 = vpop.f32.mrf.mxu0
        %v892 = vadd.f32 %v575, %v891
        %v893 = vpop.f32.mrf.mxu0
        %894 = vmatprep.mubr.f32.mxu0 0.0
        %895 = vmatmul.mubr.f32.gmra.mxu0 %v313
        %v896 = vpop.f32.mrf.mxu0
        %v897 = vadd.f32 %v580, %v896
        %v898 = vpop.f32.mrf.mxu0
        %899 = vmatprep.mubr.f32.mxu0 0.0
        %900 = vmatmul.mubr.f32.gmra.mxu0 %v316
        %v901 = vpop.f32.mrf.mxu0
        %v902 = vadd.f32 %v585, %v901
        %v903 = vpop.f32.mrf.mxu0
        %904 = vmatprep.mubr.f32.mxu0 0.0
        %905 = vmatmul.mubr.f32.gmra.mxu0 %v319
        %v906 = vpop.f32.mrf.mxu0
        %v907 = vadd.f32 %v590, %v906
        %v908 = vpop.f32.mrf.mxu0
        %909 = vmatprep.mubr.f32.mxu0 0.0
        %910 = vmatmul.mubr.f32.gmra.mxu0 %v322
        %v911 = vpop.f32.mrf.mxu0
        %v912 = vadd.f32 %v595, %v911
        %v913 = vpop.f32.mrf.mxu0
        %914 = vmatprep.mubr.f32.mxu0 0.0
        %915 = vmatmul.mubr.f32.gmra.mxu0 %v325
        %v916 = vpop.f32.mrf.mxu0
        %v917 = vadd.f32 %v600, %v916
        %v918 = vpop.f32.mrf.mxu0
        %919 = vmatprep.mubr.f32.mxu0 0.0
        %920 = vmatmul.mubr.f32.gmra.mxu0 %v328
        %v921 = vpop.f32.mrf.mxu0
        %v922 = vadd.f32 %v605, %v921
        %v923 = vpop.f32.mrf.mxu0
        %924 = vmatprep.mubr.f32.mxu0 0.0
        %925 = vmatmul.mubr.f32.gmra.mxu0 %v331
        %v926 = vpop.f32.mrf.mxu0
        %v927 = vadd.f32 %v610, %v926
        %v928 = vpop.f32.mrf.mxu0
        %929 = vmatprep.mubr.f32.mxu0 0.0
        %930 = vmatmul.mubr.f32.gmra.mxu0 %v334
        %v931 = vpop.f32.mrf.mxu0
        %v932 = vadd.f32 %v615, %v931
        %v933 = vpop.f32.mrf.mxu0
        %934 = vmatprep.mubr.f32.mxu0 0.0
        %935 = vmatmul.mubr.f32.gmra.mxu0 %v337
        %v936 = vpop.f32.mrf.mxu0
        %v937 = vadd.f32 %v620, %v936
        %v938 = vpop.f32.mrf.mxu0
        %939 = vmatprep.mubr.f32.mxu0 0.0
        %940 = vmatmul.mubr.f32.gmra.mxu0 %v340
        %v941 = vpop.f32.mrf.mxu0
        %v942 = vadd.f32 %v625, %v941
        %v943 = vpop.f32.mrf.mxu0
        %944 = vmatprep.mubr.f32.mxu0 0.0
        %945 = vmatmul.mubr.f32.gmra.mxu0 %v343
        %v946 = vpop.f32.mrf.mxu0
        %v947 = vadd.f32 %v630, %v946
        %v948 = vpop.f32.mrf.mxu0
        %949 = vmatprep.mubr.f32.mxu0 0.0
        %950 = vmatmul.mubr.f32.gmra.mxu0 %v346
        %v951 = vpop.f32.mrf.mxu0
        %v952 = vadd.f32 %v635, %v951
        %v953 = vpop.f32.mrf.mxu0
        %954 = vmatprep.mubr.f32.mxu0 0.0
        %955 = vmatmul.mubr.f32.gmra.mxu0 %v349
        %v956 = vpop.f32.mrf.mxu0
        %v957 = vadd.f32 %v640, %v956
        %v958 = vpop.f32.mrf.mxu0
        %959 = vmatprep.mubr.f32.mxu0 0.0
        %960 = vmatmul.mubr.f32.gmra.mxu0 %v352
        %v961 = vpop.f32.mrf.mxu0
        %v962 = vadd.f32 %v645, %v961
        %v963 = vpop.f32.mrf.mxu0
        %964 = vmatprep.mubr.f32.mxu0 0.0
        %965 = vmatmul.mubr.f32.gmra.mxu0 %v355
        %v966 = vpop.f32.mrf.mxu0
        %v967 = vadd.f32 %v650, %v966
        %v968 = vpop.f32.mrf.mxu0
        %969 = vmatprep.mubr.f32.mxu0 0.0
        %970 = vmatmul.mubr.f32.gmra.mxu0 %v358
        %v971 = vpop.f32.mrf.mxu0
        %v972 = vadd.f32 %v655, %v971
        %v973 = vpop.f32.mrf.mxu0
        %974 = vmatprep.mubr.f32.mxu0 0.0
        %975 = vmatmul.mubr.f32.gmra.mxu0 %v361
        %v976 = vpop.f32.mrf.mxu0
        %v977 = vadd.f32 %v660, %v976
        %v978 = vpop.f32.mrf.mxu0
        %979 = vmatprep.mubr.f32.mxu0 0.0
        %980 = vmatmul.mubr.f32.gmra.mxu0 %v364
        %v981 = vpop.f32.mrf.mxu0
        %v982 = vadd.f32 %v665, %v981
        %v983 = vpop.f32.mrf.mxu0
        %984 = vmatprep.mubr.f32.mxu0 0.0
        %985 = vmatmul.mubr.f32.gmra.mxu0 %v367
        %v986 = vpop.f32.mrf.mxu0
        %v987 = vadd.f32 %v670, %v986
        %v988 = vpop.f32.mrf.mxu0
        %989 = vmatprep.mubr.f32.mxu0 0.0
        %990 = vmatmul.mubr.f32.gmra.mxu0 %v370
        %v991 = vpop.f32.mrf.mxu0
        %v992 = vadd.f32 %v675, %v991
        %v993 = vpop.f32.mrf.mxu0
        %994 = vmatprep.mubr.f32.mxu0 0.0
        %995 = vmatmul.mubr.f32.gmra.mxu0 %v373
        %v996 = vpop.f32.mrf.mxu0
        %v997 = vadd.f32 %v680, %v996
        %v998 = vpop.f32.mrf.mxu0
        %999 = vmatprep.mubr.f32.mxu0 0.0
        %1000 = vmatmul.mubr.f32.gmra.mxu0 %v376
        %v1001 = vpop.f32.mrf.mxu0
        %v1002 = vadd.f32 %v685, %v1001
        %v1003 = vpop.f32.mrf.mxu0
        %1004 = vmatprep.mubr.f32.mxu0 0.0
        %1005 = vmatmul.mubr.f32.gmra.mxu0 %v379
        %v1006 = vpop.f32.mrf.mxu0
        %v1007 = vadd.f32 %v690, %v1006
        %v1008 = vpop.f32.mrf.mxu0
        %1009 = vmatprep.mubr.f32.mxu0 0.0
        %1010 = vmatmul.mubr.f32.gmra.mxu0 %v382
        %v1011 = vpop.f32.mrf.mxu0
        %v1012 = vadd.f32 %v695, %v1011
        %v1013 = vpop.f32.mrf.mxu0
        %1014 = vmatprep.mubr.f32.mxu0 0.0
        %1015 = vmatmul.mubr.f32.gmra.mxu0 %v385
        %v1016 = vpop.f32.mrf.mxu0
        %v1017 = vadd.f32 %v700, %v1016
        %v1018 = vpop.f32.mrf.mxu0
        %1019 = vmatprep.mubr.f32.mxu0 0.0
        %1020 = vmatmul.mubr.f32.gmra.mxu0 %v388
        %v1021 = vpop.f32.mrf.mxu0
        %v1022 = vadd.f32 %v705, %v1021
        %v1023 = vpop.f32.mrf.mxu0
        %1024 = vdwg.mxu0
        %v1025 = vld [vmem:[%s196 + $0x30] sm:$0xff]
        %v1026 = vld [vmem:[%s196 + $0x38] sm:$0xff]
        %v1027 = vld [vmem:[%s196 + $0x40] sm:$0xff]
        %v1028 = vld [vmem:[%s196 + $0x48] sm:$0xff]
        %v1029 = vld [vmem:[%s196 + $0x50] sm:$0xff]
        %v1030 = vld [vmem:[%s196 + $0x58] sm:$0xff]
        %v1031 = vld [vmem:[%s196 + $0x60] sm:$0xff]
        %v1032 = vld [vmem:[%s196 + $0x68] sm:$0xff]
        %v1033 = vld [vmem:[%s196 + $0x70] sm:$0xff]
        %v1034 = vld [vmem:[%s196 + $0x78] sm:$0xff]
        %v1035 = vld [vmem:[%s196 + $0x80] sm:$0xff]
        %v1036 = vld [vmem:[%s196 + $0x88] sm:$0xff]
        %v1037 = vld [vmem:[%s196 + $0x90] sm:$0xff]
        %v1038 = vld [vmem:[%s196 + $0x98] sm:$0xff]
        %v1039 = vld [vmem:[%s196 + $0xa0] sm:$0xff]
        %v1040 = vld [vmem:[%s196 + $0xa8] sm:$0xff]
        %v1041 = vld [vmem:[%s196 + $0xb0] sm:$0xff]
        %v1042 = vld [vmem:[%s196 + $0xb8] sm:$0xff]
        %v1043 = vld [vmem:[%s196 + $0xc0] sm:$0xff]
        %v1044 = vld [vmem:[%s196 + $0xc8] sm:$0xff]
        %v1045 = vld [vmem:[%s196 + $0xd0] sm:$0xff]
        %v1046 = vld [vmem:[%s196 + $0xd8] sm:$0xff]
        %v1047 = vld [vmem:[%s196 + $0xe0] sm:$0xff]
        %v1048 = vld [vmem:[%s196 + $0xe8] sm:$0xff]
        %v1049 = vld [vmem:[%s196 + $0xf0] sm:$0xff]
        %v1050 = vld [vmem:[%s196 + $0xf8] sm:$0xff]
        %v1051 = vld [vmem:[%s196 + $0x100] sm:$0xff]
        %v1052 = vld [vmem:[%s196 + $0x108] sm:$0xff]
        %v1053 = vld [vmem:[%s196 + $0x110] sm:$0xff]
        %v1054 = vld [vmem:[%s196 + $0x118] sm:$0xff]
        %v1055 = vld [vmem:[%s196 + $0x120] sm:$0xff]
        %v1056 = vld [vmem:[%s196 + $0x128] sm:$0xff]
        %v1057 = vld [vmem:[%s196 + $0x130] sm:$0xff]
        %v1058 = vld [vmem:[%s196 + $0x138] sm:$0xff]
        %v1059 = vld [vmem:[%s196 + $0x140] sm:$0xff]
        %v1060 = vld [vmem:[%s196 + $0x148] sm:$0xff]
        %v1061 = vld [vmem:[%s196 + $0x150] sm:$0xff]
        %v1062 = vld [vmem:[%s196 + $0x158] sm:$0xff]
        %v1063 = vld [vmem:[%s196 + $0x160] sm:$0xff]
        %v1064 = vld [vmem:[%s196 + $0x168] sm:$0xff]
        %v1065 = vld [vmem:[%s196 + $0x170] sm:$0xff]
        %v1066 = vld [vmem:[%s196 + $0x178] sm:$0xff]
        %v1067 = vld [vmem:[%s196 + $0x180] sm:$0xff]
        %v1068 = vld [vmem:[%s196 + $0x188] sm:$0xff]
        %v1069 = vld [vmem:[%s196 + $0x190] sm:$0xff]
        %v1070 = vld [vmem:[%s196 + $0x198] sm:$0xff]
        %v1071 = vld [vmem:[%s196 + $0x1a0] sm:$0xff]
        %v1072 = vld [vmem:[%s196 + $0x1a8] sm:$0xff]
        %s1073 = scalar_lea.vmem %s1, 32
        %v1074 = vld [vmem:[%s1073] sm:$0xff]
        %v1075 = vld [vmem:[%s1073 + $0x8] sm:$0xf]
        %v1077 = vsel %vm254, %v1025, 0
        %v1080 = vsel %vm254, %v1026, 0
        %v1083 = vsel %vm254, %v1027, 0
        %v1086 = vsel %vm254, %v1028, 0
        %v1089 = vsel %vm254, %v1029, 0
        %v1092 = vsel %vm254, %v1030, 0
        %v1095 = vsel %vm254, %v1031, 0
        %v1098 = vsel %vm254, %v1032, 0
        %v1101 = vsel %vm254, %v1033, 0
        %v1104 = vsel %vm254, %v1034, 0
        %v1107 = vsel %vm254, %v1035, 0
        %v1110 = vsel %vm254, %v1036, 0
        %v1113 = vsel %vm254, %v1037, 0
        %v1116 = vsel %vm254, %v1038, 0
        %v1119 = vsel %vm254, %v1039, 0
        %v1122 = vsel %vm254, %v1040, 0
        %v1125 = vsel %vm254, %v1041, 0
        %v1128 = vsel %vm254, %v1042, 0
        %v1131 = vsel %vm254, %v1043, 0
        %v1134 = vsel %vm254, %v1044, 0
        %v1137 = vsel %vm254, %v1045, 0
        %v1140 = vsel %vm254, %v1046, 0
        %v1143 = vsel %vm254, %v1047, 0
        %v1146 = vsel %vm254, %v1048, 0
        %v1149 = vsel %vm254, %v1049, 0
        %v1152 = vsel %vm254, %v1050, 0
        %v1155 = vsel %vm254, %v1051, 0
        %v1158 = vsel %vm254, %v1052, 0
        %v1161 = vsel %vm254, %v1053, 0
        %v1164 = vsel %vm254, %v1054, 0
        %v1167 = vsel %vm254, %v1055, 0
        %v1170 = vsel %vm254, %v1056, 0
        %v1173 = vsel %vm254, %v1057, 0
        %v1176 = vsel %vm254, %v1058, 0
        %v1179 = vsel %vm254, %v1059, 0
        %v1182 = vsel %vm254, %v1060, 0
        %v1185 = vsel %vm254, %v1061, 0
        %v1188 = vsel %vm254, %v1062, 0
        %v1191 = vsel %vm254, %v1063, 0
        %v1194 = vsel %vm254, %v1064, 0
        %v1197 = vsel %vm254, %v1065, 0
        %v1200 = vsel %vm254, %v1066, 0
        %v1203 = vsel %vm254, %v1067, 0
        %v1206 = vsel %vm254, %v1068, 0
        %v1209 = vsel %vm254, %v1069, 0
        %v1212 = vsel %vm254, %v1070, 0
        %v1215 = vsel %vm254, %v1071, 0
        %v1218 = vsel %vm254, %v1072, 0
        %v1221 = vsel %vm399, %v1075, 0
        %1223 = vmatprep.subr.mxu0 0.0
        %1224 = vmatpush1.msra.mxu0 0.0
        %1225 = vmatprep.subr.mxu0 0.0
        %1226 = vmatpush1.msra.mxu0 0.0
        %1227 = vmatprep.subr.mxu0 0.0
        %1228 = vmatpush1.msra.mxu0 0.0
        %1229 = vmatprep.subr.mxu0 0.0
        %1230 = vmatpush1.msra.mxu0 0.0
        %1231 = vmatprep.subr.mxu0 0.0
        %1232 = vmatpush1.msra.mxu0 0.0
        %1233 = vmatprep.subr.mxu0 0.0
        %1234 = vmatpush1.msra.mxu0 0.0
        %1235 = vmatprep.subr.mxu0 0.0
        %1236 = vmatpush1.msra.mxu0 0.0
        %1237 = vmatprep.subr.mxu0 0.0
        %1238 = vmatpush1.msra.mxu0 0.0
        %1239 = vmatprep.subr.mxu0 0.0
        %1240 = vmatpush1.msra.mxu0 0.0
        %1241 = vmatprep.subr.mxu0 0.0
        %1242 = vmatpush1.msra.mxu0 0.0
        %1243 = vmatprep.subr.mxu0 0.0
        %1244 = vmatpush1.msra.mxu0 0.0
        %1245 = vmatprep.subr.mxu0 0.0
        %1246 = vmatpush1.msra.mxu0 0.0
        %1247 = vmatprep.subr.mxu0 0.0
        %1248 = vmatpush1.msra.mxu0 0.0
        %1249 = vmatprep.subr.mxu0 0.0
        %1250 = vmatpush1.msra.mxu0 0.0
        %1251 = vmatprep.subr.mxu0 0.0
        %1252 = vmatpush1.msra.mxu0 %v1221
        %1253 = vmatprep.subr.mxu0 0.0
        %1254 = vmatpush1.msra.mxu0 %v1074
        %1255 = vmatprep.subr.mxu0 0.0
        %1256 = vmatpush2.msra.mxu0 0.0
        %1257 = vmatprep.subr.mxu0 0.0
        %1258 = vmatpush2.msra.mxu0 0.0
        %1259 = vmatprep.subr.mxu0 0.0
        %1260 = vmatpush2.msra.mxu0 0.0
        %1261 = vmatprep.subr.mxu0 0.0
        %1262 = vmatpush2.msra.mxu0 0.0
        %1263 = vmatprep.subr.mxu0 0.0
        %1264 = vmatpush2.msra.mxu0 0.0
        %1265 = vmatprep.subr.mxu0 0.0
        %1266 = vmatpush2.msra.mxu0 0.0
        %1267 = vmatprep.subr.mxu0 0.0
        %1268 = vmatpush2.msra.mxu0 0.0
        %1269 = vmatprep.subr.mxu0 0.0
        %1270 = vmatpush2.msra.mxu0 0.0
        %1271 = vmatprep.subr.mxu0 0.0
        %1272 = vmatpush2.msra.mxu0 0.0
        %1273 = vmatprep.subr.mxu0 0.0
        %1274 = vmatpush2.msra.mxu0 0.0
        %1275 = vmatprep.subr.mxu0 0.0
        %1276 = vmatpush2.msra.mxu0 0.0
        %1277 = vmatprep.subr.mxu0 0.0
        %1278 = vmatpush2.msra.mxu0 0.0
        %1279 = vmatprep.subr.mxu0 0.0
        %1280 = vmatpush2.msra.mxu0 0.0
        %1281 = vmatprep.subr.mxu0 0.0
        %1282 = vmatpush2.msra.mxu0 0.0
        %1283 = vmatprep.subr.mxu0 0.0
        %1284 = vmatpush2.msra.mxu0 0.0
        %1285 = vmatprep.subr.mxu0 0.0
        %1286 = vmatpush2.msra.mxu0 0.0
        %1287 = vmatprep.mubr.f32.mxu0 0.0
        %1288 = vmatmul.mubr.f32.gmra.mxu0 %v1077
        %v1289 = vpop.f32.mrf.mxu0
        %v1290 = vadd.f32 0.0, %v1289
        %v1291 = vpop.f32.mrf.mxu0
        %1292 = vmatprep.mubr.f32.mxu0 0.0
        %1293 = vmatmul.mubr.f32.gmra.mxu0 %v1080
        %v1294 = vpop.f32.mrf.mxu0
        %v1295 = vadd.f32 0.0, %v1294
        %v1296 = vpop.f32.mrf.mxu0
        %1297 = vmatprep.mubr.f32.mxu0 0.0
        %1298 = vmatmul.mubr.f32.gmra.mxu0 %v1083
        %v1299 = vpop.f32.mrf.mxu0
        %v1300 = vadd.f32 0.0, %v1299
        %v1301 = vpop.f32.mrf.mxu0
        %1302 = vmatprep.mubr.f32.mxu0 0.0
        %1303 = vmatmul.mubr.f32.gmra.mxu0 %v1086
        %v1304 = vpop.f32.mrf.mxu0
        %v1305 = vadd.f32 0.0, %v1304
        %v1306 = vpop.f32.mrf.mxu0
        %1307 = vmatprep.mubr.f32.mxu0 0.0
        %1308 = vmatmul.mubr.f32.gmra.mxu0 %v1089
        %v1309 = vpop.f32.mrf.mxu0
        %v1310 = vadd.f32 0.0, %v1309
        %v1311 = vpop.f32.mrf.mxu0
        %1312 = vmatprep.mubr.f32.mxu0 0.0
        %1313 = vmatmul.mubr.f32.gmra.mxu0 %v1092
        %v1314 = vpop.f32.mrf.mxu0
        %v1315 = vadd.f32 0.0, %v1314
        %v1316 = vpop.f32.mrf.mxu0
        %1317 = vmatprep.mubr.f32.mxu0 0.0
        %1318 = vmatmul.mubr.f32.gmra.mxu0 %v1095
        %v1319 = vpop.f32.mrf.mxu0
        %v1320 = vadd.f32 0.0, %v1319
        %v1321 = vpop.f32.mrf.mxu0
        %1322 = vmatprep.mubr.f32.mxu0 0.0
        %1323 = vmatmul.mubr.f32.gmra.mxu0 %v1098
        %v1324 = vpop.f32.mrf.mxu0
        %v1325 = vadd.f32 0.0, %v1324
        %v1326 = vpop.f32.mrf.mxu0
        %1327 = vmatprep.mubr.f32.mxu0 0.0
        %1328 = vmatmul.mubr.f32.gmra.mxu0 %v1101
        %v1329 = vpop.f32.mrf.mxu0
        %v1330 = vadd.f32 0.0, %v1329
        %v1331 = vpop.f32.mrf.mxu0
        %1332 = vmatprep.mubr.f32.mxu0 0.0
        %1333 = vmatmul.mubr.f32.gmra.mxu0 %v1104
        %v1334 = vpop.f32.mrf.mxu0
        %v1335 = vadd.f32 0.0, %v1334
        %v1336 = vpop.f32.mrf.mxu0
        %1337 = vmatprep.mubr.f32.mxu0 0.0
        %1338 = vmatmul.mubr.f32.gmra.mxu0 %v1107
        %v1339 = vpop.f32.mrf.mxu0
        %v1340 = vadd.f32 0.0, %v1339
        %v1341 = vpop.f32.mrf.mxu0
        %1342 = vmatprep.mubr.f32.mxu0 0.0
        %1343 = vmatmul.mubr.f32.gmra.mxu0 %v1110
        %v1344 = vpop.f32.mrf.mxu0
        %v1345 = vadd.f32 0.0, %v1344
        %v1346 = vpop.f32.mrf.mxu0
        %1347 = vmatprep.mubr.f32.mxu0 0.0
        %1348 = vmatmul.mubr.f32.gmra.mxu0 %v1113
        %v1349 = vpop.f32.mrf.mxu0
        %v1350 = vadd.f32 0.0, %v1349
        %v1351 = vpop.f32.mrf.mxu0
        %1352 = vmatprep.mubr.f32.mxu0 0.0
        %1353 = vmatmul.mubr.f32.gmra.mxu0 %v1116
        %v1354 = vpop.f32.mrf.mxu0
        %v1355 = vadd.f32 0.0, %v1354
        %v1356 = vpop.f32.mrf.mxu0
        %1357 = vmatprep.mubr.f32.mxu0 0.0
        %1358 = vmatmul.mubr.f32.gmra.mxu0 %v1119
        %v1359 = vpop.f32.mrf.mxu0
        %v1360 = vadd.f32 0.0, %v1359
        %v1361 = vpop.f32.mrf.mxu0
        %1362 = vmatprep.mubr.f32.mxu0 0.0
        %1363 = vmatmul.mubr.f32.gmra.mxu0 %v1122
        %v1364 = vpop.f32.mrf.mxu0
        %v1365 = vadd.f32 0.0, %v1364
        %v1366 = vpop.f32.mrf.mxu0
        %1367 = vmatprep.mubr.f32.mxu0 0.0
        %1368 = vmatmul.mubr.f32.gmra.mxu0 %v1125
        %v1369 = vpop.f32.mrf.mxu0
        %v1370 = vadd.f32 0.0, %v1369
        %v1371 = vpop.f32.mrf.mxu0
        %1372 = vmatprep.mubr.f32.mxu0 0.0
        %1373 = vmatmul.mubr.f32.gmra.mxu0 %v1128
        %v1374 = vpop.f32.mrf.mxu0
        %v1375 = vadd.f32 0.0, %v1374
        %v1376 = vpop.f32.mrf.mxu0
        %1377 = vmatprep.mubr.f32.mxu0 0.0
        %1378 = vmatmul.mubr.f32.gmra.mxu0 %v1131
        %v1379 = vpop.f32.mrf.mxu0
        %v1380 = vadd.f32 0.0, %v1379
        %v1381 = vpop.f32.mrf.mxu0
        %1382 = vmatprep.mubr.f32.mxu0 0.0
        %1383 = vmatmul.mubr.f32.gmra.mxu0 %v1134
        %v1384 = vpop.f32.mrf.mxu0
        %v1385 = vadd.f32 0.0, %v1384
        %v1386 = vpop.f32.mrf.mxu0
        %1387 = vmatprep.mubr.f32.mxu0 0.0
        %1388 = vmatmul.mubr.f32.gmra.mxu0 %v1137
        %v1389 = vpop.f32.mrf.mxu0
        %v1390 = vadd.f32 0.0, %v1389
        %v1391 = vpop.f32.mrf.mxu0
        %1392 = vmatprep.mubr.f32.mxu0 0.0
        %1393 = vmatmul.mubr.f32.gmra.mxu0 %v1140
        %v1394 = vpop.f32.mrf.mxu0
        %v1395 = vadd.f32 0.0, %v1394
        %v1396 = vpop.f32.mrf.mxu0
        %1397 = vmatprep.mubr.f32.mxu0 0.0
        %1398 = vmatmul.mubr.f32.gmra.mxu0 %v1143
        %v1399 = vpop.f32.mrf.mxu0
        %v1400 = vadd.f32 0.0, %v1399
        %v1401 = vpop.f32.mrf.mxu0
        %1402 = vmatprep.mubr.f32.mxu0 0.0
        %1403 = vmatmul.mubr.f32.gmra.mxu0 %v1146
        %v1404 = vpop.f32.mrf.mxu0
        %v1405 = vadd.f32 0.0, %v1404
        %v1406 = vpop.f32.mrf.mxu0
        %1407 = vmatprep.mubr.f32.mxu0 0.0
        %1408 = vmatmul.mubr.f32.gmra.mxu0 %v1149
        %v1409 = vpop.f32.mrf.mxu0
        %v1410 = vadd.f32 0.0, %v1409
        %v1411 = vpop.f32.mrf.mxu0
        %1412 = vmatprep.mubr.f32.mxu0 0.0
        %1413 = vmatmul.mubr.f32.gmra.mxu0 %v1152
        %v1414 = vpop.f32.mrf.mxu0
        %v1415 = vadd.f32 0.0, %v1414
        %v1416 = vpop.f32.mrf.mxu0
        %1417 = vmatprep.mubr.f32.mxu0 0.0
        %1418 = vmatmul.mubr.f32.gmra.mxu0 %v1155
        %v1419 = vpop.f32.mrf.mxu0
        %v1420 = vadd.f32 0.0, %v1419
        %v1421 = vpop.f32.mrf.mxu0
        %1422 = vmatprep.mubr.f32.mxu0 0.0
        %1423 = vmatmul.mubr.f32.gmra.mxu0 %v1158
        %v1424 = vpop.f32.mrf.mxu0
        %v1425 = vadd.f32 0.0, %v1424
        %v1426 = vpop.f32.mrf.mxu0
        %1427 = vmatprep.mubr.f32.mxu0 0.0
        %1428 = vmatmul.mubr.f32.gmra.mxu0 %v1161
        %v1429 = vpop.f32.mrf.mxu0
        %v1430 = vadd.f32 0.0, %v1429
        %v1431 = vpop.f32.mrf.mxu0
        %1432 = vmatprep.mubr.f32.mxu0 0.0
        %1433 = vmatmul.mubr.f32.gmra.mxu0 %v1164
        %v1434 = vpop.f32.mrf.mxu0
        %v1435 = vadd.f32 0.0, %v1434
        %v1436 = vpop.f32.mrf.mxu0
        %1437 = vmatprep.mubr.f32.mxu0 0.0
        %1438 = vmatmul.mubr.f32.gmra.mxu0 %v1167
        %v1439 = vpop.f32.mrf.mxu0
        %v1440 = vadd.f32 0.0, %v1439
        %v1441 = vpop.f32.mrf.mxu0
        %1442 = vmatprep.mubr.f32.mxu0 0.0
        %1443 = vmatmul.mubr.f32.gmra.mxu0 %v1170
        %v1444 = vpop.f32.mrf.mxu0
        %v1445 = vadd.f32 0.0, %v1444
        %v1446 = vpop.f32.mrf.mxu0
        %1447 = vmatprep.mubr.f32.mxu0 0.0
        %1448 = vmatmul.mubr.f32.gmra.mxu0 %v1173
        %v1449 = vpop.f32.mrf.mxu0
        %v1450 = vadd.f32 0.0, %v1449
        %v1451 = vpop.f32.mrf.mxu0
        %1452 = vmatprep.mubr.f32.mxu0 0.0
        %1453 = vmatmul.mubr.f32.gmra.mxu0 %v1176
        %v1454 = vpop.f32.mrf.mxu0
        %v1455 = vadd.f32 0.0, %v1454
        %v1456 = vpop.f32.mrf.mxu0
        %1457 = vmatprep.mubr.f32.mxu0 0.0
        %1458 = vmatmul.mubr.f32.gmra.mxu0 %v1179
        %v1459 = vpop.f32.mrf.mxu0
        %v1460 = vadd.f32 0.0, %v1459
        %v1461 = vpop.f32.mrf.mxu0
        %1462 = vmatprep.mubr.f32.mxu0 0.0
        %1463 = vmatmul.mubr.f32.gmra.mxu0 %v1182
        %v1464 = vpop.f32.mrf.mxu0
        %v1465 = vadd.f32 0.0, %v1464
        %v1466 = vpop.f32.mrf.mxu0
        %1467 = vmatprep.mubr.f32.mxu0 0.0
        %1468 = vmatmul.mubr.f32.gmra.mxu0 %v1185
        %v1469 = vpop.f32.mrf.mxu0
        %v1470 = vadd.f32 0.0, %v1469
        %v1471 = vpop.f32.mrf.mxu0
        %1472 = vmatprep.mubr.f32.mxu0 0.0
        %1473 = vmatmul.mubr.f32.gmra.mxu0 %v1188
        %v1474 = vpop.f32.mrf.mxu0
        %v1475 = vadd.f32 0.0, %v1474
        %v1476 = vpop.f32.mrf.mxu0
        %1477 = vmatprep.mubr.f32.mxu0 0.0
        %1478 = vmatmul.mubr.f32.gmra.mxu0 %v1191
        %v1479 = vpop.f32.mrf.mxu0
        %v1480 = vadd.f32 0.0, %v1479
        %v1481 = vpop.f32.mrf.mxu0
        %1482 = vmatprep.mubr.f32.mxu0 0.0
        %1483 = vmatmul.mubr.f32.gmra.mxu0 %v1194
        %v1484 = vpop.f32.mrf.mxu0
        %v1485 = vadd.f32 0.0, %v1484
        %v1486 = vpop.f32.mrf.mxu0
        %1487 = vmatprep.mubr.f32.mxu0 0.0
        %1488 = vmatmul.mubr.f32.gmra.mxu0 %v1197
        %v1489 = vpop.f32.mrf.mxu0
        %v1490 = vadd.f32 0.0, %v1489
        %v1491 = vpop.f32.mrf.mxu0
        %1492 = vmatprep.mubr.f32.mxu0 0.0
        %1493 = vmatmul.mubr.f32.gmra.mxu0 %v1200
        %v1494 = vpop.f32.mrf.mxu0
        %v1495 = vadd.f32 0.0, %v1494
        %v1496 = vpop.f32.mrf.mxu0
        %1497 = vmatprep.mubr.f32.mxu0 0.0
        %1498 = vmatmul.mubr.f32.gmra.mxu0 %v1203
        %v1499 = vpop.f32.mrf.mxu0
        %v1500 = vadd.f32 0.0, %v1499
        %v1501 = vpop.f32.mrf.mxu0
        %1502 = vmatprep.mubr.f32.mxu0 0.0
        %1503 = vmatmul.mubr.f32.gmra.mxu0 %v1206
        %v1504 = vpop.f32.mrf.mxu0
        %v1505 = vadd.f32 0.0, %v1504
        %v1506 = vpop.f32.mrf.mxu0
        %1507 = vmatprep.mubr.f32.mxu0 0.0
        %1508 = vmatmul.mubr.f32.gmra.mxu0 %v1209
        %v1509 = vpop.f32.mrf.mxu0
        %v1510 = vadd.f32 0.0, %v1509
        %v1511 = vpop.f32.mrf.mxu0
        %1512 = vmatprep.mubr.f32.mxu0 0.0
        %1513 = vmatmul.mubr.f32.gmra.mxu0 %v1212
        %v1514 = vpop.f32.mrf.mxu0
        %v1515 = vadd.f32 0.0, %v1514
        %v1516 = vpop.f32.mrf.mxu0
        %1517 = vmatprep.mubr.f32.mxu0 0.0
        %1518 = vmatmul.mubr.f32.gmra.mxu0 %v1215
        %v1519 = vpop.f32.mrf.mxu0
        %v1520 = vadd.f32 0.0, %v1519
        %v1521 = vpop.f32.mrf.mxu0
        %1522 = vmatprep.mubr.f32.mxu0 0.0
        %1523 = vmatmul.mubr.f32.gmra.mxu0 %v1218
        %v1524 = vpop.f32.mrf.mxu0
        %v1525 = vadd.f32 0.0, %v1524
        %v1526 = vpop.f32.mrf.mxu0
        %1527 = vdwg.mxu0
        %v1528 = vadd.f32 %v787, %v1290
        %v1529 = vadd.f32 %v792, %v1295
        %v1530 = vadd.f32 %v797, %v1300
        %v1531 = vadd.f32 %v802, %v1305
        %v1532 = vadd.f32 %v807, %v1310
        %v1533 = vadd.f32 %v812, %v1315
        %v1534 = vadd.f32 %v817, %v1320
        %v1535 = vadd.f32 %v822, %v1325
        %v1536 = vadd.f32 %v827, %v1330
        %v1537 = vadd.f32 %v832, %v1335
        %v1538 = vadd.f32 %v837, %v1340
        %v1539 = vadd.f32 %v842, %v1345
        %v1540 = vadd.f32 %v847, %v1350
        %v1541 = vadd.f32 %v852, %v1355
        %v1542 = vadd.f32 %v857, %v1360
        %v1543 = vadd.f32 %v862, %v1365
        %v1544 = vadd.f32 %v867, %v1370
        %v1545 = vadd.f32 %v872, %v1375
        %v1546 = vadd.f32 %v877, %v1380
        %v1547 = vadd.f32 %v882, %v1385
        %v1548 = vadd.f32 %v887, %v1390
        %v1549 = vadd.f32 %v892, %v1395
        %v1550 = vadd.f32 %v897, %v1400
        %v1551 = vadd.f32 %v902, %v1405
        %v1552 = vadd.f32 %v907, %v1410
        %v1553 = vadd.f32 %v912, %v1415
        %v1554 = vadd.f32 %v917, %v1420
        %v1555 = vadd.f32 %v922, %v1425
        %v1556 = vadd.f32 %v927, %v1430
        %v1557 = vadd.f32 %v932, %v1435
        %v1558 = vadd.f32 %v937, %v1440
        %v1559 = vadd.f32 %v942, %v1445
        %v1560 = vadd.f32 %v947, %v1450
        %v1561 = vadd.f32 %v952, %v1455
        %v1562 = vadd.f32 %v957, %v1460
        %v1563 = vadd.f32 %v962, %v1465
        %v1564 = vadd.f32 %v967, %v1470
        %v1565 = vadd.f32 %v972, %v1475
        %v1566 = vadd.f32 %v977, %v1480
        %v1567 = vadd.f32 %v982, %v1485
        %v1568 = vadd.f32 %v987, %v1490
        %v1569 = vadd.f32 %v992, %v1495
        %v1570 = vadd.f32 %v997, %v1500
        %v1571 = vadd.f32 %v1002, %v1505
        %v1572 = vadd.f32 %v1007, %v1510
        %v1573 = vadd.f32 %v1012, %v1515
        %v1574 = vadd.f32 %v1017, %v1520
        %v1575 = vadd.f32 %v1022, %v1525
        %v1576 = vmul.f32 %v1528, 0.23570226
        %v1577 = vmul.f32 %v1529, 0.23570226
        %v1578 = vmul.f32 %v1530, 0.23570226
        %v1579 = vmul.f32 %v1531, 0.23570226
        %v1580 = vmul.f32 %v1532, 0.23570226
        %v1581 = vmul.f32 %v1533, 0.23570226
        %v1582 = vmul.f32 %v1534, 0.23570226
        %v1583 = vmul.f32 %v1535, 0.23570226
        %v1584 = vmul.f32 %v1536, 0.23570226
        %v1585 = vmul.f32 %v1537, 0.23570226
        %v1586 = vmul.f32 %v1538, 0.23570226
        %v1587 = vmul.f32 %v1539, 0.23570226
        %v1588 = vmul.f32 %v1540, 0.23570226
        %v1589 = vmul.f32 %v1541, 0.23570226
        %v1590 = vmul.f32 %v1542, 0.23570226
        %v1591 = vmul.f32 %v1543, 0.23570226
        %v1592 = vmul.f32 %v1544, 0.23570226
        %v1593 = vmul.f32 %v1545, 0.23570226
        %v1594 = vmul.f32 %v1546, 0.23570226
        %v1595 = vmul.f32 %v1547, 0.23570226
        %v1596 = vmul.f32 %v1548, 0.23570226
        %v1597 = vmul.f32 %v1549, 0.23570226
        %v1598 = vmul.f32 %v1550, 0.23570226
        %v1599 = vmul.f32 %v1551, 0.23570226
        %v1600 = vmul.f32 %v1552, 0.23570226
        %v1601 = vmul.f32 %v1553, 0.23570226
        %v1602 = vmul.f32 %v1554, 0.23570226
        %v1603 = vmul.f32 %v1555, 0.23570226
        %v1604 = vmul.f32 %v1556, 0.23570226
        %v1605 = vmul.f32 %v1557, 0.23570226
        %v1606 = vmul.f32 %v1558, 0.23570226
        %v1607 = vmul.f32 %v1559, 0.23570226
        %v1608 = vmul.f32 %v1560, 0.23570226
        %v1609 = vmul.f32 %v1561, 0.23570226
        %v1610 = vmul.f32 %v1562, 0.23570226
        %v1611 = vmul.f32 %v1563, 0.23570226
        %v1612 = vmul.f32 %v1564, 0.23570226
        %v1613 = vmul.f32 %v1565, 0.23570226
        %v1614 = vmul.f32 %v1566, 0.23570226
        %v1615 = vmul.f32 %v1567, 0.23570226
        %v1616 = vmul.f32 %v1568, 0.23570226
        %v1617 = vmul.f32 %v1569, 0.23570226
        %v1618 = vmul.f32 %v1570, 0.23570226
        %v1619 = vmul.f32 %v1571, 0.23570226
        %v1620 = vmul.f32 %v1572, 0.23570226
        %v1621 = vmul.f32 %v1573, 0.23570226
        %v1622 = vmul.f32 %v1574, 0.23570226
        %v1623 = vmul.f32 %v1575, 0.23570226
        %v1624 = vld [vmem:[%s2] sm:$0x1]
        %v1626 = vlaneseq
        %v1627 = vshrl.u32 %v1626, 7
        %v1628 = vsub.s32 0, %v1627
        %v1629 = vrot.slane %v1624, %v1628
        %v1631 = vadd.f32 %v1576, %v1629
        %v1632 = vadd.f32 %v1577, %v1629
        %v1633 = vadd.f32 %v1578, %v1629
        %v1634 = vadd.f32 %v1579, %v1629
        %v1635 = vadd.f32 %v1580, %v1629
        %v1636 = vadd.f32 %v1581, %v1629
        %v1637 = vadd.f32 %v1582, %v1629
        %v1638 = vadd.f32 %v1583, %v1629
        %v1639 = vadd.f32 %v1584, %v1629
        %v1640 = vadd.f32 %v1585, %v1629
        %v1641 = vadd.f32 %v1586, %v1629
        %v1642 = vadd.f32 %v1587, %v1629
        %v1643 = vadd.f32 %v1588, %v1629
        %v1644 = vadd.f32 %v1589, %v1629
        %v1645 = vadd.f32 %v1590, %v1629
        %v1646 = vadd.f32 %v1591, %v1629
        %v1647 = vadd.f32 %v1592, %v1629
        %v1648 = vadd.f32 %v1593, %v1629
        %v1649 = vadd.f32 %v1594, %v1629
        %v1650 = vadd.f32 %v1595, %v1629
        %v1651 = vadd.f32 %v1596, %v1629
        %v1652 = vadd.f32 %v1597, %v1629
        %v1653 = vadd.f32 %v1598, %v1629
        %v1654 = vadd.f32 %v1599, %v1629
        %v1655 = vadd.f32 %v1600, %v1629
        %v1656 = vadd.f32 %v1601, %v1629
        %v1657 = vadd.f32 %v1602, %v1629
        %v1658 = vadd.f32 %v1603, %v1629
        %v1659 = vadd.f32 %v1604, %v1629
        %v1660 = vadd.f32 %v1605, %v1629
        %v1661 = vadd.f32 %v1606, %v1629
        %v1662 = vadd.f32 %v1607, %v1629
        %v1663 = vadd.f32 %v1608, %v1629
        %v1664 = vadd.f32 %v1609, %v1629
        %v1665 = vadd.f32 %v1610, %v1629
        %v1666 = vadd.f32 %v1611, %v1629
        %v1667 = vadd.f32 %v1612, %v1629
        %v1668 = vadd.f32 %v1613, %v1629
        %v1669 = vadd.f32 %v1614, %v1629
        %v1670 = vadd.f32 %v1615, %v1629
        %v1671 = vadd.f32 %v1616, %v1629
        %v1672 = vadd.f32 %v1617, %v1629
        %v1673 = vadd.f32 %v1618, %v1629
        %v1674 = vadd.f32 %v1619, %v1629
        %v1675 = vadd.f32 %v1620, %v1629
        %v1676 = vadd.f32 %v1621, %v1629
        %v1677 = vadd.f32 %v1622, %v1629
        %v1678 = vadd.f32 %v1623, %v1629
        %1679 = vst [vmem:[%s187] sm:$0xff] %v1631
        %1680 = vst [vmem:[%s187 + $0x8] sm:$0xff] %v1632
        %1681 = vst [vmem:[%s187 + $0x10] sm:$0xff] %v1633
        %1682 = vst [vmem:[%s187 + $0x18] sm:$0xff] %v1634
        %1683 = vst [vmem:[%s187 + $0x20] sm:$0xff] %v1635
        %1684 = vst [vmem:[%s187 + $0x28] sm:$0xff] %v1636
        %1685 = vst [vmem:[%s187 + $0x30] sm:$0xff] %v1637
        %1686 = vst [vmem:[%s187 + $0x38] sm:$0xff] %v1638
        %1687 = vst [vmem:[%s187 + $0x40] sm:$0xff] %v1639
        %1688 = vst [vmem:[%s187 + $0x48] sm:$0xff] %v1640
        %1689 = vst [vmem:[%s187 + $0x50] sm:$0xff] %v1641
        %1690 = vst [vmem:[%s187 + $0x58] sm:$0xff] %v1642
        %1691 = vst [vmem:[%s187 + $0x60] sm:$0xff] %v1643
        %1692 = vst [vmem:[%s187 + $0x68] sm:$0xff] %v1644
        %1693 = vst [vmem:[%s187 + $0x70] sm:$0xff] %v1645
        %1694 = vst [vmem:[%s187 + $0x78] sm:$0xff] %v1646
        %1695 = vst [vmem:[%s187 + $0x80] sm:$0xff] %v1647
        %1696 = vst [vmem:[%s187 + $0x88] sm:$0xff] %v1648
        %1697 = vst [vmem:[%s187 + $0x90] sm:$0xff] %v1649
        %1698 = vst [vmem:[%s187 + $0x98] sm:$0xff] %v1650
        %1699 = vst [vmem:[%s187 + $0xa0] sm:$0xff] %v1651
        %1700 = vst [vmem:[%s187 + $0xa8] sm:$0xff] %v1652
        %1701 = vst [vmem:[%s187 + $0xb0] sm:$0xff] %v1653
        %1702 = vst [vmem:[%s187 + $0xb8] sm:$0xff] %v1654
        %1703 = vst [vmem:[%s187 + $0xc0] sm:$0xff] %v1655
        %1704 = vst [vmem:[%s187 + $0xc8] sm:$0xff] %v1656
        %1705 = vst [vmem:[%s187 + $0xd0] sm:$0xff] %v1657
        %1706 = vst [vmem:[%s187 + $0xd8] sm:$0xff] %v1658
        %1707 = vst [vmem:[%s187 + $0xe0] sm:$0xff] %v1659
        %1708 = vst [vmem:[%s187 + $0xe8] sm:$0xff] %v1660
        %1709 = vst [vmem:[%s187 + $0xf0] sm:$0xff] %v1661
        %1710 = vst [vmem:[%s187 + $0xf8] sm:$0xff] %v1662
        %1711 = vst [vmem:[%s187 + $0x100] sm:$0xff] %v1663
        %1712 = vst [vmem:[%s187 + $0x108] sm:$0xff] %v1664
        %1713 = vst [vmem:[%s187 + $0x110] sm:$0xff] %v1665
        %1714 = vst [vmem:[%s187 + $0x118] sm:$0xff] %v1666
        %1715 = vst [vmem:[%s187 + $0x120] sm:$0xff] %v1667
        %1716 = vst [vmem:[%s187 + $0x128] sm:$0xff] %v1668
        %1717 = vst [vmem:[%s187 + $0x130] sm:$0xff] %v1669
        %1718 = vst [vmem:[%s187 + $0x138] sm:$0xff] %v1670
        %1719 = vst [vmem:[%s187 + $0x140] sm:$0xff] %v1671
        %1720 = vst [vmem:[%s187 + $0x148] sm:$0xff] %v1672
        %1721 = vst [vmem:[%s187 + $0x150] sm:$0xff] %v1673
        %1722 = vst [vmem:[%s187 + $0x158] sm:$0xff] %v1674
        %1723 = vst [vmem:[%s187 + $0x160] sm:$0xff] %v1675
        %1724 = vst [vmem:[%s187 + $0x168] sm:$0xff] %v1676
        %1725 = vst [vmem:[%s187 + $0x170] sm:$0xff] %v1677
        %1726 = vst [vmem:[%s187 + $0x178] sm:$0xff] %v1678
        %s1727 = sand.u32 %s109, 1
        %s1728 = scalar_lea.sflag [#allocation3], %s1727
        %s1729 = sand.u32 %s109, 1
        %s1730 = smul.addr %s1729, 384
        %s1731 = scalar_lea.vmem [#allocation2], %s1730
        // Predicated region
        $region33: #{tpu_custom_call.1} parent=31 // pred_check
          %p1732 = pneg %p119
        $region34: #{tpu_custom_call.1} parent=31 // pred_check_branch
          %1734 = sbr.rel (%p1732) target = $region36
        $region35: #{tpu_custom_call.1} parent=31 // pred_region
          %s1735 = smul.u32 48, %s22
          %s1737 = ssub.s32 6144, 6144
          %1738 = vsyncadd %s1728, %s1737
          %s1739 = smul.addr %s21, 48
          %s1740 = sadd.s32 %s1735, %s1739
          %s1741 = smul.addr %s1740, 128
          %s1742 = scalar_lea.hbm %s3, %s1741
          %s1743 = sshll.u32 %s1731, 4
          %s1744 = int_to_ptr.vmem [resolvable:$true] %s1743
          %1749 = dma.vmem_to_hbm [thread:$0]  %s1744, 6144, %s1742, %s1728, 128, 128, 8
        $region36: #{tpu_custom_call.1} parent=31 // pred_fallthru
          _
      $region32: #{tpu_custom_call.1} parent=5 // pred_fallthru
        _
      %p1750 = scmp.le.s32.totalorder 2, %s12
      // Predicated region
      $region37: #{tpu_custom_call.1} parent=5 // pred_check
        %p1751 = pneg %p1750
      $region38: #{tpu_custom_call.1} parent=5 // pred_check_branch
        %1753 = sbr.rel (%p1751) target = $region40
      $region39: #{tpu_custom_call.1} parent=5 // pred_region
        %s1754 = ssub.s32 %s12, 2
        // Predicated region
        $region41: #{tpu_custom_call.1} parent=39 // pred_check
          %p1755 = pneg %p125
        $region42: #{tpu_custom_call.1} parent=39 // pred_check_branch
          %1757 = sbr.rel (%p1755) target = $region44
        $region43: #{tpu_custom_call.1} parent=39 // pred_region
          %s1758 = sand.u32 %s110, 1
          %s1759 = scalar_lea.sflag [#allocation3], %s1758
          %s1760 = sand.u32 %s110, 1
          %s1761 = smul.addr %s1760, 384
          %s1762 = scalar_lea.vmem [#allocation2], %s1761
          %1763 = dma.done %s1759, 6144
        $region44: #{tpu_custom_call.1} parent=39 // pred_fallthru
          _
      $region40: #{tpu_custom_call.1} parent=5 // pred_fallthru
        _
    $region6: #{tpu_custom_call.1} parent=1 // loop_footer
      %s16 = sadd.s32 1, %s12
    $region7: #{tpu_custom_call.1} parent=1 // loop_footer_branch
      %11 = sbr.rel target = $region3
    $region8: #{tpu_custom_call.1} parent=1 // loop_exit
      _
    %1764 = vsyncpa [#allocation3], 1
    %s1765 = scalar_lea.sflag [#allocation3], 1
    %1766 = vsyncpa %s1765, 1

</llo_original>
